<compile_context>
chip_gen: v7x
topology: tpu7x:2x2x1
jax: 0.10.0
libtpu: 0.0.40
codegen_flags: <defaults>
</compile_context>

<pallas_src>
import numpy as np
import jax
import jax.numpy as jnp
from jax.experimental import pallas as pl
from jax.experimental.pallas import tpu as pltpu


def sign_kernel(xunf_ref, wconv_ref, bconv_ref,
                wih_ref, whh_ref, bgate_ref,
                wattn_ref, battn_ref, wfc_ref, bfc_ref,
                logits_ref, weights_ref, lstm_ref):
    B, T, G2 = lstm_ref.shape          # G2 = 2H, BiLSTM output width
    H = G2 // 2
    G = whh_ref.shape[1]               # 8H gate columns: [i_f,i_b,f_f,f_b,g_f,g_b,o_f,o_b]
    f32 = jnp.float32
    bf16 = jnp.bfloat16

    # ---- Conv1d(Cin -> 64, k=3, pad=1): ONE bf16 MXU matmul on the pre-unfolded,
    # pre-flattened (B*T, 3Cin) input, f32 accumulate, + bias + ReLU. ----
    conv = jnp.maximum(
        jnp.dot(xunf_ref[...], wconv_ref[...], preferred_element_type=f32)
        + bconv_ref[...], 0.0)                                    # (B*T, 64) f32

    # ---- LSTM input projections for BOTH directions, all timesteps, one matmul ----
    xg = (jnp.dot(conv.astype(bf16), wih_ref[...], preferred_element_type=f32)
          + bgate_ref[...]).reshape(B, T, G)                      # (B, T, 8H) f32

    # Recurrent weights loaded once, resident in bf16 (native MXU rate on v6e/v7x).
    whh = whh_ref[...]                                            # (2H, 8H), block-diag

    # Lane mask selecting the forward-direction half of every 2H-wide gate block.
    lane = jax.lax.broadcasted_iota(jnp.int32, (B, G), 1)
    fwd_mask = (lane % G2) < H                                    # (B, 8H)

    # ---- fused bidirectional recurrence: ONE matmul per step advances fwd and bwd ----
    # State layout: h = [h_f | h_b], c = [c_f | c_b]  (B, 2H) f32.
    # The direction select stays inside the (statically unrolled) loop on purpose: xg is
    # only a few resident vregs, the select does not depend on h so it overlaps the MXU
    # op, and a bulk pre-select would pin T extra (B, 8H) live values.
    # TODO(synk): production T -> lax.fori_loop(unroll=4..8) over a (T, B, 8H) x_sel
    # scratch with dynamic leading-index reads instead of this static unroll.
    h = jnp.zeros((B, G2), f32)
    c = jnp.zeros((B, G2), f32)
    for s in range(T):
        # fwd gate columns consume time s, bwd gate columns consume time T-1-s.
        x_s = jnp.where(fwd_mask, xg[:, s, :], xg[:, T - 1 - s, :])          # (B, 8H)
        gates = x_s + jnp.dot(h.astype(bf16), whh, preferred_element_type=f32)
        sg_if = jax.nn.sigmoid(gates[:, :2 * G2])    # i|f blocks, one 4H-wide EUP pass
        g = jnp.tanh(gates[:, 2 * G2:3 * G2])        # tanh only on the g block (2H)
        o = jax.nn.sigmoid(gates[:, 3 * G2:])        # o block (2H)
        c = sg_if[:, G2:] * c + sg_if[:, :G2] * g
        h = o * jnp.tanh(c)
        # Straight to the VMEM scratch: bounded vreg live ranges, no stack/where pass.
        lstm_ref[:, s, :H] = h[:, :H]                # forward half belongs to time s
        lstm_ref[:, T - 1 - s, H:] = h[:, H:]        # backward half belongs to T-1-s

    lstm_out = lstm_ref[...]                         # (B, T, 2H) f32

    # ---- attention, lane-dense: scores (B, T) with T on lanes, softmax over lanes ----
    wa = wattn_ref[...].reshape(1, 1, G2)
    scores = jnp.sum(lstm_out * wa, axis=-1) + battn_ref[...]     # (B, T)
    w = jax.nn.softmax(scores, axis=-1)                           # (B, T)
    weights_ref[...] = w                                          # lane-dense output
    context = jnp.sum(w[:, :, None] * lstm_out, axis=1)           # (B, 2H)

    # ---- dropout = identity (eval mode); final classifier kept in f32 ----
    # TODO(synk): pad NC (and 3*Cin) up to 128 lanes at production size to avoid
    # masked partial stores/loads.
    logits_ref[...] = (jnp.dot(context, wfc_ref[...], preferred_element_type=f32)
                       + bfc_ref[...])


def init_params(key, input_size, hidden_size, num_classes):
    ks = jax.random.split(key, 14)
    H = hidden_size

    def rnd(k, shape):
        return (0.1 * jax.random.normal(k, shape)).astype(jnp.float32)

    return dict(
        conv_w=rnd(ks[0], (64, input_size, 3)),       # torch Conv1d weight layout
        conv_b=rnd(ks[1], (64,)),
        w_ih_f=rnd(ks[2], (4 * H, 64)),               # torch LSTM layouts
        w_hh_f=rnd(ks[3], (4 * H, H)),
        b_ih_f=rnd(ks[4], (4 * H,)),
        b_hh_f=rnd(ks[5], (4 * H,)),
        w_ih_b=rnd(ks[6], (4 * H, 64)),
        w_hh_b=rnd(ks[7], (4 * H, H)),
        b_ih_b=rnd(ks[8], (4 * H,)),
        b_hh_b=rnd(ks[9], (4 * H,)),
        attn_w=rnd(ks[10], (1, 2 * H)),
        attn_b=rnd(ks[11], (1,)),
        fc_w=rnd(ks[12], (num_classes, 2 * H)),
        fc_b=rnd(ks[13], (num_classes,)),
    )


def _pack_bidir_gate_weights(P, H):
    """Fused BiLSTM weights with column layout [i_f,i_b,f_f,f_b,g_f,g_b,o_f,o_b].

    w_ih_cat: (64, 8H)   input projection for both directions.
    w_hh_cat: (2H, 8H)   block-diagonal per gate: rows 0:H only feed *_f columns,
                         rows H:2H only feed *_b columns, so [h_f|h_b] @ w_hh_cat
                         advances both directions with a single matmul.
    b_cat:    (1, 8H)    b_ih + b_hh folded, same layout.
    """
    f32 = jnp.float32
    zH = jnp.zeros((H, H), f32)
    bf = P['b_ih_f'] + P['b_hh_f']
    bb = P['b_ih_b'] + P['b_hh_b']
    wih_blocks, whh_blocks, b_blocks = [], [], []
    for k in range(4):                                   # torch gate order i, f, g, o
        sl = slice(k * H, (k + 1) * H)
        wih_blocks += [P['w_ih_f'][sl].T, P['w_ih_b'][sl].T]
        whh_blocks += [jnp.concatenate([P['w_hh_f'][sl].T, zH], axis=0),
                       jnp.concatenate([zH, P['w_hh_b'][sl].T], axis=0)]
        b_blocks += [bf[sl], bb[sl]]
    w_ih_cat = jnp.concatenate(wih_blocks, axis=1)       # (64, 8H)
    w_hh_cat = jnp.concatenate(whh_blocks, axis=1)       # (2H, 8H)
    b_cat = jnp.concatenate(b_blocks)[None, :]           # (1, 8H)
    return w_ih_cat, w_hh_cat, b_cat


def sign_cnn_bilstm_attn_forward(x, P):
    """x: (B, T, input_size) f32 -> (logits (B, num_classes), weights (B, T, 1))."""
    B, T, Cin = x.shape
    H = P['w_hh_f'].shape[1]
    NC = P['fc_w'].shape[0]
    bf16 = jnp.bfloat16

    # glue: unfold for the k=3/pad=1 conv and flatten to (B*T, 3Cin) in HBM (free in
    # XLA) so the kernel does no reshape of a Ref read.  Column (k*Cin + c) <-> x[t+k-1, c].
    # TODO(synk): for v5e-scale B/T move the unfold in-kernel (3 shifted matmuls) to cut
    # the largest HBM->VMEM transfer 3x.
    xpad = jnp.pad(x, ((0, 0), (1, 1), (0, 0)))
    x_unf = jnp.concatenate([xpad[:, k:k + T, :] for k in range(3)], axis=-1)
    x_unf = x_unf.reshape(B * T, 3 * Cin).astype(bf16)

    # glue: matmul-friendly (in, out) layouts; bf16 for everything feeding the MXU,
    # f32 for biases and the attention / classifier weights.
    w_conv = jnp.transpose(P['conv_w'], (2, 1, 0)).reshape(3 * Cin, 64).astype(bf16)
    b_conv = P['conv_b'][None, :]
    w_ih_cat, w_hh_cat, b_cat = _pack_bidir_gate_weights(P, H)
    w_ih_cat = w_ih_cat.astype(bf16)
    w_hh_cat = w_hh_cat.astype(bf16)
    w_attn = P['attn_w']                     # (1, 2H) f32
    b_attn = P['attn_b'].reshape(1, 1)
    w_fc = P['fc_w'].T                       # (2H, NC) f32
    b_fc = P['fc_b'][None, :]

    # TODO(synk): production B/T -> add a batch-tile grid (>=2 tiles so both v7x
    # TensorCores engage) with dimension_semantics=("parallel",); size each tile so
    # xg / lstm scratch stay under ~24 MiB on v7x (64 MiB VMEM) and set vmem_limit_bytes.
    vmem = pl.BlockSpec(memory_space=pltpu.MemorySpace.VMEM)
    logits, weights2d = pl.pallas_call(
        sign_kernel,
        out_shape=(jax.ShapeDtypeStruct((B, NC), jnp.float32),
                   jax.ShapeDtypeStruct((B, T), jnp.float32)),
        in_specs=[vmem] * 10,
        out_specs=(vmem, vmem),
        scratch_shapes=[pltpu.VMEM((B, T, 2 * H), jnp.float32)],
    )(x_unf, w_conv, b_conv,
      w_ih_cat, w_hh_cat, b_cat,
      w_attn, b_attn, w_fc, b_fc)
    return logits, weights2d.reshape(B, T, 1)


def reference_forward(x, P):
    """Pure-JAX f32 reference mirroring the PyTorch forward (eval mode)."""
    hi = jax.lax.Precision.HIGHEST
    B, T, Cin = x.shape
    H = P['w_hh_f'].shape[1]

    xt = jnp.transpose(x, (0, 2, 1))                       # (B, Cin, T)  NCW
    xpad = jnp.pad(xt, ((0, 0), (0, 0), (1, 1)))
    y = jnp.broadcast_to(P['conv_b'][None, :, None], (B, 64, T)).astype(jnp.float32)
    for k in range(3):
        y = y + jnp.einsum('oc,bct->bot', P['conv_w'][:, :, k],
                           xpad[:, :, k:k + T], precision=hi)
    z = jnp.transpose(jnp.maximum(y, 0.0), (0, 2, 1))      # (B, T, 64)

    def run_dir(Wih, Whh, bih, bhh, reverse):
        h = jnp.zeros((B, H)); c = jnp.zeros((B, H))
        outs = [None] * T
        ts = range(T - 1, -1, -1) if reverse else range(T)
        for t in ts:
            g = (jnp.dot(z[:, t, :], Wih.T, precision=hi)
                 + jnp.dot(h, Whh.T, precision=hi) + bih + bhh)
            i = jax.nn.sigmoid(g[:, :H]); f = jax.nn.sigmoid(g[:, H:2 * H])
            gg = jnp.tanh(g[:, 2 * H:3 * H]); o = jax.nn.sigmoid(g[:, 3 * H:])
            c = f * c + i * gg
            h = o * jnp.tanh(c)
            outs[t] = h
        return jnp.stack(outs, axis=1)

    hf = run_dir(P['w_ih_f'], P['w_hh_f'], P['b_ih_f'], P['b_hh_f'], False)
    hb = run_dir(P['w_ih_b'], P['w_hh_b'], P['b_ih_b'], P['b_hh_b'], True)
    lstm_out = jnp.concatenate([hf, hb], axis=-1)          # (B, T, 2H)
    scores = jnp.dot(lstm_out, P['attn_w'].T, precision=hi) + P['attn_b']
    w = jax.nn.softmax(scores, axis=1)
    context = jnp.sum(w * lstm_out, axis=1)
    logits = jnp.dot(context, P['fc_w'].T, precision=hi) + P['fc_b']
    return logits, w


if __name__ == "__main__":
    key = jax.random.PRNGKey(0)
    kx, kp = jax.random.split(key)

    B, T = 2, 8
    input_size, hidden_size, num_classes = 16, 32, 10

    x = jax.random.normal(kx, (B, T, input_size), dtype=jnp.float32)
    P = init_params(kp, input_size, hidden_size, num_classes)

    logits, weights = sign_cnn_bilstm_attn_forward(x, P)
    jax.block_until_ready((logits, weights))

    ref_logits, ref_weights = reference_forward(x, P)
    # Tolerance loosened vs the all-f32 version: MXU operands are bf16 (f32 accumulate),
    # while the reference runs f32 at Precision.HIGHEST.
    np.testing.assert_allclose(np.asarray(logits), np.asarray(ref_logits),
                               rtol=2e-2, atol=2e-2)
    np.testing.assert_allclose(np.asarray(weights), np.asarray(ref_weights),
                               rtol=2e-2, atol=2e-2)
    print("KERNEL_OK")
</pallas_src>

<mosaic_0001>
module attributes {stable_mosaic.version = 11 : i64} {
  func.func @sign_kernel(%arg0: memref<16x48xbf16, #tpu.memory_space<vmem>>, %arg1: memref<48x64xbf16, #tpu.memory_space<vmem>>, %arg2: memref<1x64xf32, #tpu.memory_space<vmem>>, %arg3: memref<64x256xbf16, #tpu.memory_space<vmem>>, %arg4: memref<64x256xbf16, #tpu.memory_space<vmem>>, %arg5: memref<1x256xf32, #tpu.memory_space<vmem>>, %arg6: memref<1x64xf32, #tpu.memory_space<vmem>>, %arg7: memref<1x1xf32, #tpu.memory_space<vmem>>, %arg8: memref<64x10xf32, #tpu.memory_space<vmem>>, %arg9: memref<1x10xf32, #tpu.memory_space<vmem>>, %arg10: memref<2x10xf32, #tpu.memory_space<vmem>>, %arg11: memref<2x8xf32, #tpu.memory_space<vmem>>, %arg12: memref<2x8x64xf32, #tpu.memory_space<vmem>>) attributes {dimension_semantics = [], scalar_prefetch = 0 : i64, scratch_operands = 1 : i64, tpu.core_type = #tpu.core_type<tc>} {
    %c0 = arith.constant 0 : index
    %c0_0 = arith.constant 0 : index
    %0 = vector.load %arg0[%c0, %c0_0] : memref<16x48xbf16, #tpu.memory_space<vmem>>, vector<16x48xbf16>
    %c0_1 = arith.constant 0 : index
    %c0_2 = arith.constant 0 : index
    %1 = vector.load %arg1[%c0_1, %c0_2] : memref<48x64xbf16, #tpu.memory_space<vmem>>, vector<48x64xbf16>
    %cst = arith.constant dense<0.000000e+00> : vector<16x64xf32>
    %2 = tpu.matmul %0, %1, %cst {dimension_numbers = #tpu.dot_dimension_numbers<[1], [0], [0], [1], [0, 0, 1, 1], [], []>} : vector<16x48xbf16>, vector<48x64xbf16>, vector<16x64xf32> -> vector<16x64xf32>
    %c0_3 = arith.constant 0 : index
    %c0_4 = arith.constant 0 : index
    %3 = vector.load %arg2[%c0_3, %c0_4] : memref<1x64xf32, #tpu.memory_space<vmem>>, vector<1x64xf32>
    %4 = vector.broadcast %3 : vector<1x64xf32> to vector<16x64xf32>
    %5 = arith.addf %2, %4 : vector<16x64xf32>
    %cst_5 = arith.constant 0.000000e+00 : f32
    %6 = vector.broadcast %cst_5 : f32 to vector<16x64xf32>
    %7 = arith.maximumf %5, %6 : vector<16x64xf32>
    %8 = arith.truncf %7 : vector<16x64xf32> to vector<16x64xbf16>
    %c0_6 = arith.constant 0 : index
    %c0_7 = arith.constant 0 : index
    %9 = vector.load %arg3[%c0_6, %c0_7] : memref<64x256xbf16, #tpu.memory_space<vmem>>, vector<64x256xbf16>
    %cst_8 = arith.constant dense<0.000000e+00> : vector<16x256xf32>
    %10 = tpu.matmul %8, %9, %cst_8 {dimension_numbers = #tpu.dot_dimension_numbers<[1], [0], [0], [1], [0, 0, 1, 1], [], []>} : vector<16x64xbf16>, vector<64x256xbf16>, vector<16x256xf32> -> vector<16x256xf32>
    %c0_9 = arith.constant 0 : index
    %c0_10 = arith.constant 0 : index
    %11 = vector.load %arg5[%c0_9, %c0_10] : memref<1x256xf32, #tpu.memory_space<vmem>>, vector<1x256xf32>
    %12 = vector.broadcast %11 : vector<1x256xf32> to vector<16x256xf32>
    %13 = arith.addf %10, %12 : vector<16x256xf32>
    %14 = vector.shape_cast %13 : vector<16x256xf32> to vector<2x8x256xf32>
    %c0_11 = arith.constant 0 : index
    %c0_12 = arith.constant 0 : index
    %15 = vector.load %arg4[%c0_11, %c0_12] : memref<64x256xbf16, #tpu.memory_space<vmem>>, vector<64x256xbf16>
    %16 = tpu.iota {dimensions = array<i32: 1>} : vector<2x256xi32>
    %c64_i32 = arith.constant 64 : i32
    %c0_i32 = arith.constant 0 : i32
    %17 = arith.cmpi eq, %c64_i32, %c0_i32 : i32
    %c1_i32 = arith.constant 1 : i32
    %18 = arith.select %17, %c1_i32, %c64_i32 : i32
    %19 = vector.broadcast %18 : i32 to vector<2x256xi32>
    %20 = arith.remsi %16, %19 : vector<2x256xi32>
    %c0_i32_13 = arith.constant 0 : i32
    %21 = vector.broadcast %c0_i32_13 : i32 to vector<2x256xi32>
    %22 = arith.cmpi ne, %20, %21 : vector<2x256xi32>
    %c0_i32_14 = arith.constant 0 : i32
    %23 = vector.broadcast %c0_i32_14 : i32 to vector<2x256xi32>
    %24 = arith.cmpi slt, %20, %23 : vector<2x256xi32>
    %c0_i32_15 = arith.constant 0 : i32
    %25 = arith.cmpi slt, %18, %c0_i32_15 : i32
    %26 = vector.broadcast %25 : i1 to vector<2x256xi1>
    %27 = vector.broadcast %26 : vector<2x256xi1> to vector<2x256xi1>
    %28 = arith.xori %24, %27 : vector<2x256xi1>
    %29 = arith.andi %28, %22 : vector<2x256xi1>
    %30 = vector.broadcast %18 : i32 to vector<2x256xi32>
    %31 = arith.addi %20, %30 : vector<2x256xi32>
    %32 = arith.select %29, %31, %20 : vector<2x256xi1>, vector<2x256xi32>
    %c32_i32 = arith.constant 32 : i32
    %33 = vector.broadcast %c32_i32 : i32 to vector<2x256xi32>
    %34 = arith.cmpi slt, %32, %33 : vector<2x256xi32>
    %cst_16 = arith.constant 0.000000e+00 : f32
    %35 = vector.broadcast %cst_16 : f32 to vector<2x64xf32>
    %cst_17 = arith.constant 0.000000e+00 : f32
    %36 = vector.broadcast %cst_17 : f32 to vector<2x64xf32>
    %37 = vector.extract_strided_slice %14 {offsets = [0, 0, 0], sizes = [2, 1, 256], strides = [1, 1, 1]} : vector<2x8x256xf32> to vector<2x1x256xf32>
    %38 = vector.shape_cast %37 : vector<2x1x256xf32> to vector<2x256xf32>
    %39 = vector.extract_strided_slice %14 {offsets = [0, 7, 0], sizes = [2, 1, 256], strides = [1, 1, 1]} : vector<2x8x256xf32> to vector<2x1x256xf32>
    %40 = vector.shape_cast %39 : vector<2x1x256xf32> to vector<2x256xf32>
    %41 = arith.select %34, %38, %40 : vector<2x256xi1>, vector<2x256xf32>
    %42 = arith.truncf %35 : vector<2x64xf32> to vector<2x64xbf16>
    %cst_18 = arith.constant dense<0.000000e+00> : vector<2x256xf32>
    %43 = tpu.matmul %42, %15, %cst_18 {dimension_numbers = #tpu.dot_dimension_numbers<[1], [0], [0], [1], [0, 0, 1, 1], [], []>} : vector<2x64xbf16>, vector<64x256xbf16>, vector<2x256xf32> -> vector<2x256xf32>
    %44 = arith.addf %41, %43 : vector<2x256xf32>
    %45 = vector.extract_strided_slice %44 {offsets = [0, 0], sizes = [2, 128], strides = [1, 1]} : vector<2x256xf32> to vector<2x128xf32>
    %46 = arith.negf %45 : vector<2x128xf32>
    %47 = math.exp %46 : vector<2x128xf32>
    %cst_19 = arith.constant 1.000000e+00 : f32
    %48 = vector.broadcast %cst_19 : f32 to vector<2x128xf32>
    %49 = arith.addf %48, %47 : vector<2x128xf32>
    %50 = arith.divf %48, %49 : vector<2x128xf32>
    %51 = vector.extract_strided_slice %44 {offsets = [0, 128], sizes = [2, 64], strides = [1, 1]} : vector<2x256xf32> to vector<2x64xf32>
    %52 = math.tanh %51 : vector<2x64xf32>
    %53 = vector.extract_strided_slice %44 {offsets = [0, 192], sizes = [2, 64], strides = [1, 1]} : vector<2x256xf32> to vector<2x64xf32>
    %54 = arith.negf %53 : vector<2x64xf32>
    %55 = math.exp %54 : vector<2x64xf32>
    %cst_20 = arith.constant 1.000000e+00 : f32
    %56 = vector.broadcast %cst_20 : f32 to vector<2x64xf32>
    %57 = arith.addf %56, %55 : vector<2x64xf32>
    %58 = arith.divf %56, %57 : vector<2x64xf32>
    %59 = vector.extract_strided_slice %50 {offsets = [0, 64], sizes = [2, 64], strides = [1, 1]} : vector<2x128xf32> to vector<2x64xf32>
    %60 = arith.mulf %59, %36 : vector<2x64xf32>
    %61 = vector.extract_strided_slice %50 {offsets = [0, 0], sizes = [2, 64], strides = [1, 1]} : vector<2x128xf32> to vector<2x64xf32>
    %62 = arith.mulf %61, %52 : vector<2x64xf32>
    %63 = arith.addf %60, %62 : vector<2x64xf32>
    %64 = math.tanh %63 : vector<2x64xf32>
    %65 = arith.mulf %58, %64 : vector<2x64xf32>
    %66 = vector.extract_strided_slice %65 {offsets = [0, 0], sizes = [2, 32], strides = [1, 1]} : vector<2x64xf32> to vector<2x32xf32>
    %c0_21 = arith.constant 0 : index
    %c0_22 = arith.constant 0 : index
    %c0_23 = arith.constant 0 : index
    %67 = vector.load %arg12[%c0_21, %c0_22, %c0_23] : memref<2x8x64xf32, #tpu.memory_space<vmem>>, vector<2x1x32xf32>
    %68 = vector.shape_cast %67 : vector<2x1x32xf32> to vector<2x32xf32>
    %69 = vector.shape_cast %66 : vector<2x32xf32> to vector<2x1x32xf32>
    tpu.vector_store %arg12[%c0_21, %c0_22, %c0_23], %69 {strides = array<i32>} : memref<2x8x64xf32, #tpu.memory_space<vmem>>, vector<2x1x32xf32>,
    %70 = vector.extract_strided_slice %65 {offsets = [0, 32], sizes = [2, 32], strides = [1, 1]} : vector<2x64xf32> to vector<2x32xf32>
    %c0_24 = arith.constant 0 : index
    %c7 = arith.constant 7 : index
    %c32 = arith.constant 32 : index
    %71 = vector.load %arg12[%c0_24, %c7, %c32] : memref<2x8x64xf32, #tpu.memory_space<vmem>>, vector<2x1x32xf32>
    %72 = vector.shape_cast %71 : vector<2x1x32xf32> to vector<2x32xf32>
    %73 = vector.shape_cast %70 : vector<2x32xf32> to vector<2x1x32xf32>
    tpu.vector_store %arg12[%c0_24, %c7, %c32], %73 {strides = array<i32>} : memref<2x8x64xf32, #tpu.memory_space<vmem>>, vector<2x1x32xf32>,
    %74 = vector.extract_strided_slice %14 {offsets = [0, 1, 0], sizes = [2, 1, 256], strides = [1, 1, 1]} : vector<2x8x256xf32> to vector<2x1x256xf32>
    %75 = vector.shape_cast %74 : vector<2x1x256xf32> to vector<2x256xf32>
    %76 = vector.extract_strided_slice %14 {offsets = [0, 6, 0], sizes = [2, 1, 256], strides = [1, 1, 1]} : vector<2x8x256xf32> to vector<2x1x256xf32>
    %77 = vector.shape_cast %76 : vector<2x1x256xf32> to vector<2x256xf32>
    %78 = arith.select %34, %75, %77 : vector<2x256xi1>, vector<2x256xf32>
    %79 = arith.truncf %65 : vector<2x64xf32> to vector<2x64xbf16>
    %cst_25 = arith.constant dense<0.000000e+00> : vector<2x256xf32>
    %80 = tpu.matmul %79, %15, %cst_25 {dimension_numbers = #tpu.dot_dimension_numbers<[1], [0], [0], [1], [0, 0, 1, 1], [], []>} : vector<2x64xbf16>, vector<64x256xbf16>, vector<2x256xf32> -> vector<2x256xf32>
    %81 = arith.addf %78, %80 : vector<2x256xf32>
    %82 = vector.extract_strided_slice %81 {offsets = [0, 0], sizes = [2, 128], strides = [1, 1]} : vector<2x256xf32> to vector<2x128xf32>
    %83 = arith.negf %82 : vector<2x128xf32>
    %84 = math.exp %83 : vector<2x128xf32>
    %cst_26 = arith.constant 1.000000e+00 : f32
    %85 = vector.broadcast %cst_26 : f32 to vector<2x128xf32>
    %86 = arith.addf %85, %84 : vector<2x128xf32>
    %87 = arith.divf %85, %86 : vector<2x128xf32>
    %88 = vector.extract_strided_slice %81 {offsets = [0, 128], sizes = [2, 64], strides = [1, 1]} : vector<2x256xf32> to vector<2x64xf32>
    %89 = math.tanh %88 : vector<2x64xf32>
    %90 = vector.extract_strided_slice %81 {offsets = [0, 192], sizes = [2, 64], strides = [1, 1]} : vector<2x256xf32> to vector<2x64xf32>
    %91 = arith.negf %90 : vector<2x64xf32>
    %92 = math.exp %91 : vector<2x64xf32>
    %cst_27 = arith.constant 1.000000e+00 : f32
    %93 = vector.broadcast %cst_27 : f32 to vector<2x64xf32>
    %94 = arith.addf %93, %92 : vector<2x64xf32>
    %95 = arith.divf %93, %94 : vector<2x64xf32>
    %96 = vector.extract_strided_slice %87 {offsets = [0, 64], sizes = [2, 64], strides = [1, 1]} : vector<2x128xf32> to vector<2x64xf32>
    %97 = arith.mulf %96, %63 : vector<2x64xf32>
    %98 = vector.extract_strided_slice %87 {offsets = [0, 0], sizes = [2, 64], strides = [1, 1]} : vector<2x128xf32> to vector<2x64xf32>
    %99 = arith.mulf %98, %89 : vector<2x64xf32>
    %100 = arith.addf %97, %99 : vector<2x64xf32>
    %101 = math.tanh %100 : vector<2x64xf32>
    %102 = arith.mulf %95, %101 : vector<2x64xf32>
    %103 = vector.extract_strided_slice %102 {offsets = [0, 0], sizes = [2, 32], strides = [1, 1]} : vector<2x64xf32> to vector<2x32xf32>
    %c0_28 = arith.constant 0 : index
    %c1 = arith.constant 1 : index
    %c0_29 = arith.constant 0 : index
    %104 = vector.load %arg12[%c0_28, %c1, %c0_29] : memref<2x8x64xf32, #tpu.memory_space<vmem>>, vector<2x1x32xf32>
    %105 = vector.shape_cast %104 : vector<2x1x32xf32> to vector<2x32xf32>
    %106 = vector.shape_cast %103 : vector<2x32xf32> to vector<2x1x32xf32>
    tpu.vector_store %arg12[%c0_28, %c1, %c0_29], %106 {strides = array<i32>} : memref<2x8x64xf32, #tpu.memory_space<vmem>>, vector<2x1x32xf32>,
    %107 = vector.extract_strided_slice %102 {offsets = [0, 32], sizes = [2, 32], strides = [1, 1]} : vector<2x64xf32> to vector<2x32xf32>
    %c0_30 = arith.constant 0 : index
    %c6 = arith.constant 6 : index
    %c32_31 = arith.constant 32 : index
    %108 = vector.load %arg12[%c0_30, %c6, %c32_31] : memref<2x8x64xf32, #tpu.memory_space<vmem>>, vector<2x1x32xf32>
    %109 = vector.shape_cast %108 : vector<2x1x32xf32> to vector<2x32xf32>
    %110 = vector.shape_cast %107 : vector<2x32xf32> to vector<2x1x32xf32>
    tpu.vector_store %arg12[%c0_30, %c6, %c32_31], %110 {strides = array<i32>} : memref<2x8x64xf32, #tpu.memory_space<vmem>>, vector<2x1x32xf32>,
    %111 = vector.extract_strided_slice %14 {offsets = [0, 2, 0], sizes = [2, 1, 256], strides = [1, 1, 1]} : vector<2x8x256xf32> to vector<2x1x256xf32>
    %112 = vector.shape_cast %111 : vector<2x1x256xf32> to vector<2x256xf32>
    %113 = vector.extract_strided_slice %14 {offsets = [0, 5, 0], sizes = [2, 1, 256], strides = [1, 1, 1]} : vector<2x8x256xf32> to vector<2x1x256xf32>
    %114 = vector.shape_cast %113 : vector<2x1x256xf32> to vector<2x256xf32>
    %115 = arith.select %34, %112, %114 : vector<2x256xi1>, vector<2x256xf32>
    %116 = arith.truncf %102 : vector<2x64xf32> to vector<2x64xbf16>
    %cst_32 = arith.constant dense<0.000000e+00> : vector<2x256xf32>
    %117 = tpu.matmul %116, %15, %cst_32 {dimension_numbers = #tpu.dot_dimension_numbers<[1], [0], [0], [1], [0, 0, 1, 1], [], []>} : vector<2x64xbf16>, vector<64x256xbf16>, vector<2x256xf32> -> vector<2x256xf32>
    %118 = arith.addf %115, %117 : vector<2x256xf32>
    %119 = vector.extract_strided_slice %118 {offsets = [0, 0], sizes = [2, 128], strides = [1, 1]} : vector<2x256xf32> to vector<2x128xf32>
    %120 = arith.negf %119 : vector<2x128xf32>
    %121 = math.exp %120 : vector<2x128xf32>
    %cst_33 = arith.constant 1.000000e+00 : f32
    %122 = vector.broadcast %cst_33 : f32 to vector<2x128xf32>
    %123 = arith.addf %122, %121 : vector<2x128xf32>
    %124 = arith.divf %122, %123 : vector<2x128xf32>
    %125 = vector.extract_strided_slice %118 {offsets = [0, 128], sizes = [2, 64], strides = [1, 1]} : vector<2x256xf32> to vector<2x64xf32>
    %126 = math.tanh %125 : vector<2x64xf32>
    %127 = vector.extract_strided_slice %118 {offsets = [0, 192], sizes = [2, 64], strides = [1, 1]} : vector<2x256xf32> to vector<2x64xf32>
    %128 = arith.negf %127 : vector<2x64xf32>
    %129 = math.exp %128 : vector<2x64xf32>
    %cst_34 = arith.constant 1.000000e+00 : f32
    %130 = vector.broadcast %cst_34 : f32 to vector<2x64xf32>
    %131 = arith.addf %130, %129 : vector<2x64xf32>
    %132 = arith.divf %130, %131 : vector<2x64xf32>
    %133 = vector.extract_strided_slice %124 {offsets = [0, 64], sizes = [2, 64], strides = [1, 1]} : vector<2x128xf32> to vector<2x64xf32>
    %134 = arith.mulf %133, %100 : vector<2x64xf32>
    %135 = vector.extract_strided_slice %124 {offsets = [0, 0], sizes = [2, 64], strides = [1, 1]} : vector<2x128xf32> to vector<2x64xf32>
    %136 = arith.mulf %135, %126 : vector<2x64xf32>
    %137 = arith.addf %134, %136 : vector<2x64xf32>
    %138 = math.tanh %137 : vector<2x64xf32>
    %139 = arith.mulf %132, %138 : vector<2x64xf32>
    %140 = vector.extract_strided_slice %139 {offsets = [0, 0], sizes = [2, 32], strides = [1, 1]} : vector<2x64xf32> to vector<2x32xf32>
    %c0_35 = arith.constant 0 : index
    %c2 = arith.constant 2 : index
    %c0_36 = arith.constant 0 : index
    %141 = vector.load %arg12[%c0_35, %c2, %c0_36] : memref<2x8x64xf32, #tpu.memory_space<vmem>>, vector<2x1x32xf32>
    %142 = vector.shape_cast %141 : vector<2x1x32xf32> to vector<2x32xf32>
    %143 = vector.shape_cast %140 : vector<2x32xf32> to vector<2x1x32xf32>
    tpu.vector_store %arg12[%c0_35, %c2, %c0_36], %143 {strides = array<i32>} : memref<2x8x64xf32, #tpu.memory_space<vmem>>, vector<2x1x32xf32>,
    %144 = vector.extract_strided_slice %139 {offsets = [0, 32], sizes = [2, 32], strides = [1, 1]} : vector<2x64xf32> to vector<2x32xf32>
    %c0_37 = arith.constant 0 : index
    %c5 = arith.constant 5 : index
    %c32_38 = arith.constant 32 : index
    %145 = vector.load %arg12[%c0_37, %c5, %c32_38] : memref<2x8x64xf32, #tpu.memory_space<vmem>>, vector<2x1x32xf32>
    %146 = vector.shape_cast %145 : vector<2x1x32xf32> to vector<2x32xf32>
    %147 = vector.shape_cast %144 : vector<2x32xf32> to vector<2x1x32xf32>
    tpu.vector_store %arg12[%c0_37, %c5, %c32_38], %147 {strides = array<i32>} : memref<2x8x64xf32, #tpu.memory_space<vmem>>, vector<2x1x32xf32>,
    %148 = vector.extract_strided_slice %14 {offsets = [0, 3, 0], sizes = [2, 1, 256], strides = [1, 1, 1]} : vector<2x8x256xf32> to vector<2x1x256xf32>
    %149 = vector.shape_cast %148 : vector<2x1x256xf32> to vector<2x256xf32>
    %150 = vector.extract_strided_slice %14 {offsets = [0, 4, 0], sizes = [2, 1, 256], strides = [1, 1, 1]} : vector<2x8x256xf32> to vector<2x1x256xf32>
    %151 = vector.shape_cast %150 : vector<2x1x256xf32> to vector<2x256xf32>
    %152 = arith.select %34, %149, %151 : vector<2x256xi1>, vector<2x256xf32>
    %153 = arith.truncf %139 : vector<2x64xf32> to vector<2x64xbf16>
    %cst_39 = arith.constant dense<0.000000e+00> : vector<2x256xf32>
    %154 = tpu.matmul %153, %15, %cst_39 {dimension_numbers = #tpu.dot_dimension_numbers<[1], [0], [0], [1], [0, 0, 1, 1], [], []>} : vector<2x64xbf16>, vector<64x256xbf16>, vector<2x256xf32> -> vector<2x256xf32>
    %155 = arith.addf %152, %154 : vector<2x256xf32>
    %156 = vector.extract_strided_slice %155 {offsets = [0, 0], sizes = [2, 128], strides = [1, 1]} : vector<2x256xf32> to vector<2x128xf32>
    %157 = arith.negf %156 : vector<2x128xf32>
    %158 = math.exp %157 : vector<2x128xf32>
    %cst_40 = arith.constant 1.000000e+00 : f32
    %159 = vector.broadcast %cst_40 : f32 to vector<2x128xf32>
    %160 = arith.addf %159, %158 : vector<2x128xf32>
    %161 = arith.divf %159, %160 : vector<2x128xf32>
    %162 = vector.extract_strided_slice %155 {offsets = [0, 128], sizes = [2, 64], strides = [1, 1]} : vector<2x256xf32> to vector<2x64xf32>
    %163 = math.tanh %162 : vector<2x64xf32>
    %164 = vector.extract_strided_slice %155 {offsets = [0, 192], sizes = [2, 64], strides = [1, 1]} : vector<2x256xf32> to vector<2x64xf32>
    %165 = arith.negf %164 : vector<2x64xf32>
    %166 = math.exp %165 : vector<2x64xf32>
    %cst_41 = arith.constant 1.000000e+00 : f32
    %167 = vector.broadcast %cst_41 : f32 to vector<2x64xf32>
    %168 = arith.addf %167, %166 : vector<2x64xf32>
    %169 = arith.divf %167, %168 : vector<2x64xf32>
    %170 = vector.extract_strided_slice %161 {offsets = [0, 64], sizes = [2, 64], strides = [1, 1]} : vector<2x128xf32> to vector<2x64xf32>
    %171 = arith.mulf %170, %137 : vector<2x64xf32>
    %172 = vector.extract_strided_slice %161 {offsets = [0, 0], sizes = [2, 64], strides = [1, 1]} : vector<2x128xf32> to vector<2x64xf32>
    %173 = arith.mulf %172, %163 : vector<2x64xf32>
    %174 = arith.addf %171, %173 : vector<2x64xf32>
    %175 = math.tanh %174 : vector<2x64xf32>
    %176 = arith.mulf %169, %175 : vector<2x64xf32>
    %177 = vector.extract_strided_slice %176 {offsets = [0, 0], sizes = [2, 32], strides = [1, 1]} : vector<2x64xf32> to vector<2x32xf32>
    %c0_42 = arith.constant 0 : index
    %c3 = arith.constant 3 : index
    %c0_43 = arith.constant 0 : index
    %178 = vector.load %arg12[%c0_42, %c3, %c0_43] : memref<2x8x64xf32, #tpu.memory_space<vmem>>, vector<2x1x32xf32>
    %179 = vector.shape_cast %178 : vector<2x1x32xf32> to vector<2x32xf32>
    %180 = vector.shape_cast %177 : vector<2x32xf32> to vector<2x1x32xf32>
    tpu.vector_store %arg12[%c0_42, %c3, %c0_43], %180 {strides = array<i32>} : memref<2x8x64xf32, #tpu.memory_space<vmem>>, vector<2x1x32xf32>,
    %181 = vector.extract_strided_slice %176 {offsets = [0, 32], sizes = [2, 32], strides = [1, 1]} : vector<2x64xf32> to vector<2x32xf32>
    %c0_44 = arith.constant 0 : index
    %c4 = arith.constant 4 : index
    %c32_45 = arith.constant 32 : index
    %182 = vector.load %arg12[%c0_44, %c4, %c32_45] : memref<2x8x64xf32, #tpu.memory_space<vmem>>, vector<2x1x32xf32>
    %183 = vector.shape_cast %182 : vector<2x1x32xf32> to vector<2x32xf32>
    %184 = vector.shape_cast %181 : vector<2x32xf32> to vector<2x1x32xf32>
    tpu.vector_store %arg12[%c0_44, %c4, %c32_45], %184 {strides = array<i32>} : memref<2x8x64xf32, #tpu.memory_space<vmem>>, vector<2x1x32xf32>,
    %185 = vector.extract_strided_slice %14 {offsets = [0, 4, 0], sizes = [2, 1, 256], strides = [1, 1, 1]} : vector<2x8x256xf32> to vector<2x1x256xf32>
    %186 = vector.shape_cast %185 : vector<2x1x256xf32> to vector<2x256xf32>
    %187 = vector.extract_strided_slice %14 {offsets = [0, 3, 0], sizes = [2, 1, 256], strides = [1, 1, 1]} : vector<2x8x256xf32> to vector<2x1x256xf32>
    %188 = vector.shape_cast %187 : vector<2x1x256xf32> to vector<2x256xf32>
    %189 = arith.select %34, %186, %188 : vector<2x256xi1>, vector<2x256xf32>
    %190 = arith.truncf %176 : vector<2x64xf32> to vector<2x64xbf16>
    %cst_46 = arith.constant dense<0.000000e+00> : vector<2x256xf32>
    %191 = tpu.matmul %190, %15, %cst_46 {dimension_numbers = #tpu.dot_dimension_numbers<[1], [0], [0], [1], [0, 0, 1, 1], [], []>} : vector<2x64xbf16>, vector<64x256xbf16>, vector<2x256xf32> -> vector<2x256xf32>
    %192 = arith.addf %189, %191 : vector<2x256xf32>
    %193 = vector.extract_strided_slice %192 {offsets = [0, 0], sizes = [2, 128], strides = [1, 1]} : vector<2x256xf32> to vector<2x128xf32>
    %194 = arith.negf %193 : vector<2x128xf32>
    %195 = math.exp %194 : vector<2x128xf32>
    %cst_47 = arith.constant 1.000000e+00 : f32
    %196 = vector.broadcast %cst_47 : f32 to vector<2x128xf32>
    %197 = arith.addf %196, %195 : vector<2x128xf32>
    %198 = arith.divf %196, %197 : vector<2x128xf32>
    %199 = vector.extract_strided_slice %192 {offsets = [0, 128], sizes = [2, 64], strides = [1, 1]} : vector<2x256xf32> to vector<2x64xf32>
    %200 = math.tanh %199 : vector<2x64xf32>
    %201 = vector.extract_strided_slice %192 {offsets = [0, 192], sizes = [2, 64], strides = [1, 1]} : vector<2x256xf32> to vector<2x64xf32>
    %202 = arith.negf %201 : vector<2x64xf32>
    %203 = math.exp %202 : vector<2x64xf32>
    %cst_48 = arith.constant 1.000000e+00 : f32
    %204 = vector.broadcast %cst_48 : f32 to vector<2x64xf32>
    %205 = arith.addf %204, %203 : vector<2x64xf32>
    %206 = arith.divf %204, %205 : vector<2x64xf32>
    %207 = vector.extract_strided_slice %198 {offsets = [0, 64], sizes = [2, 64], strides = [1, 1]} : vector<2x128xf32> to vector<2x64xf32>
    %208 = arith.mulf %207, %174 : vector<2x64xf32>
    %209 = vector.extract_strided_slice %198 {offsets = [0, 0], sizes = [2, 64], strides = [1, 1]} : vector<2x128xf32> to vector<2x64xf32>
    %210 = arith.mulf %209, %200 : vector<2x64xf32>
    %211 = arith.addf %208, %210 : vector<2x64xf32>
    %212 = math.tanh %211 : vector<2x64xf32>
    %213 = arith.mulf %206, %212 : vector<2x64xf32>
    %214 = vector.extract_strided_slice %213 {offsets = [0, 0], sizes = [2, 32], strides = [1, 1]} : vector<2x64xf32> to vector<2x32xf32>
    %c0_49 = arith.constant 0 : index
    %c4_50 = arith.constant 4 : index
    %c0_51 = arith.constant 0 : index
    %215 = vector.load %arg12[%c0_49, %c4_50, %c0_51] : memref<2x8x64xf32, #tpu.memory_space<vmem>>, vector<2x1x32xf32>
    %216 = vector.shape_cast %215 : vector<2x1x32xf32> to vector<2x32xf32>
    %217 = vector.shape_cast %214 : vector<2x32xf32> to vector<2x1x32xf32>
    tpu.vector_store %arg12[%c0_49, %c4_50, %c0_51], %217 {strides = array<i32>} : memref<2x8x64xf32, #tpu.memory_space<vmem>>, vector<2x1x32xf32>,
    %218 = vector.extract_strided_slice %213 {offsets = [0, 32], sizes = [2, 32], strides = [1, 1]} : vector<2x64xf32> to vector<2x32xf32>
    %c0_52 = arith.constant 0 : index
    %c3_53 = arith.constant 3 : index
    %c32_54 = arith.constant 32 : index
    %219 = vector.load %arg12[%c0_52, %c3_53, %c32_54] : memref<2x8x64xf32, #tpu.memory_space<vmem>>, vector<2x1x32xf32>
    %220 = vector.shape_cast %219 : vector<2x1x32xf32> to vector<2x32xf32>
    %221 = vector.shape_cast %218 : vector<2x32xf32> to vector<2x1x32xf32>
    tpu.vector_store %arg12[%c0_52, %c3_53, %c32_54], %221 {strides = array<i32>} : memref<2x8x64xf32, #tpu.memory_space<vmem>>, vector<2x1x32xf32>,
    %222 = vector.extract_strided_slice %14 {offsets = [0, 5, 0], sizes = [2, 1, 256], strides = [1, 1, 1]} : vector<2x8x256xf32> to vector<2x1x256xf32>
    %223 = vector.shape_cast %222 : vector<2x1x256xf32> to vector<2x256xf32>
    %224 = vector.extract_strided_slice %14 {offsets = [0, 2, 0], sizes = [2, 1, 256], strides = [1, 1, 1]} : vector<2x8x256xf32> to vector<2x1x256xf32>
    %225 = vector.shape_cast %224 : vector<2x1x256xf32> to vector<2x256xf32>
    %226 = arith.select %34, %223, %225 : vector<2x256xi1>, vector<2x256xf32>
    %227 = arith.truncf %213 : vector<2x64xf32> to vector<2x64xbf16>
    %cst_55 = arith.constant dense<0.000000e+00> : vector<2x256xf32>
    %228 = tpu.matmul %227, %15, %cst_55 {dimension_numbers = #tpu.dot_dimension_numbers<[1], [0], [0], [1], [0, 0, 1, 1], [], []>} : vector<2x64xbf16>, vector<64x256xbf16>, vector<2x256xf32> -> vector<2x256xf32>
    %229 = arith.addf %226, %228 : vector<2x256xf32>
    %230 = vector.extract_strided_slice %229 {offsets = [0, 0], sizes = [2, 128], strides = [1, 1]} : vector<2x256xf32> to vector<2x128xf32>
    %231 = arith.negf %230 : vector<2x128xf32>
    %232 = math.exp %231 : vector<2x128xf32>
    %cst_56 = arith.constant 1.000000e+00 : f32
    %233 = vector.broadcast %cst_56 : f32 to vector<2x128xf32>
    %234 = arith.addf %233, %232 : vector<2x128xf32>
    %235 = arith.divf %233, %234 : vector<2x128xf32>
    %236 = vector.extract_strided_slice %229 {offsets = [0, 128], sizes = [2, 64], strides = [1, 1]} : vector<2x256xf32> to vector<2x64xf32>
    %237 = math.tanh %236 : vector<2x64xf32>
    %238 = vector.extract_strided_slice %229 {offsets = [0, 192], sizes = [2, 64], strides = [1, 1]} : vector<2x256xf32> to vector<2x64xf32>
    %239 = arith.negf %238 : vector<2x64xf32>
    %240 = math.exp %239 : vector<2x64xf32>
    %cst_57 = arith.constant 1.000000e+00 : f32
    %241 = vector.broadcast %cst_57 : f32 to vector<2x64xf32>
    %242 = arith.addf %241, %240 : vector<2x64xf32>
    %243 = arith.divf %241, %242 : vector<2x64xf32>
    %244 = vector.extract_strided_slice %235 {offsets = [0, 64], sizes = [2, 64], strides = [1, 1]} : vector<2x128xf32> to vector<2x64xf32>
    %245 = arith.mulf %244, %211 : vector<2x64xf32>
    %246 = vector.extract_strided_slice %235 {offsets = [0, 0], sizes = [2, 64], strides = [1, 1]} : vector<2x128xf32> to vector<2x64xf32>
    %247 = arith.mulf %246, %237 : vector<2x64xf32>
    %248 = arith.addf %245, %247 : vector<2x64xf32>
    %249 = math.tanh %248 : vector<2x64xf32>
    %250 = arith.mulf %243, %249 : vector<2x64xf32>
    %251 = vector.extract_strided_slice %250 {offsets = [0, 0], sizes = [2, 32], strides = [1, 1]} : vector<2x64xf32> to vector<2x32xf32>
    %c0_58 = arith.constant 0 : index
    %c5_59 = arith.constant 5 : index
    %c0_60 = arith.constant 0 : index
    %252 = vector.load %arg12[%c0_58, %c5_59, %c0_60] : memref<2x8x64xf32, #tpu.memory_space<vmem>>, vector<2x1x32xf32>
    %253 = vector.shape_cast %252 : vector<2x1x32xf32> to vector<2x32xf32>
    %254 = vector.shape_cast %251 : vector<2x32xf32> to vector<2x1x32xf32>
    tpu.vector_store %arg12[%c0_58, %c5_59, %c0_60], %254 {strides = array<i32>} : memref<2x8x64xf32, #tpu.memory_space<vmem>>, vector<2x1x32xf32>,
    %255 = vector.extract_strided_slice %250 {offsets = [0, 32], sizes = [2, 32], strides = [1, 1]} : vector<2x64xf32> to vector<2x32xf32>
    %c0_61 = arith.constant 0 : index
    %c2_62 = arith.constant 2 : index
    %c32_63 = arith.constant 32 : index
    %256 = vector.load %arg12[%c0_61, %c2_62, %c32_63] : memref<2x8x64xf32, #tpu.memory_space<vmem>>, vector<2x1x32xf32>
    %257 = vector.shape_cast %256 : vector<2x1x32xf32> to vector<2x32xf32>
    %258 = vector.shape_cast %255 : vector<2x32xf32> to vector<2x1x32xf32>
    tpu.vector_store %arg12[%c0_61, %c2_62, %c32_63], %258 {strides = array<i32>} : memref<2x8x64xf32, #tpu.memory_space<vmem>>, vector<2x1x32xf32>,
    %259 = vector.extract_strided_slice %14 {offsets = [0, 6, 0], sizes = [2, 1, 256], strides = [1, 1, 1]} : vector<2x8x256xf32> to vector<2x1x256xf32>
    %260 = vector.shape_cast %259 : vector<2x1x256xf32> to vector<2x256xf32>
    %261 = vector.extract_strided_slice %14 {offsets = [0, 1, 0], sizes = [2, 1, 256], strides = [1, 1, 1]} : vector<2x8x256xf32> to vector<2x1x256xf32>
    %262 = vector.shape_cast %261 : vector<2x1x256xf32> to vector<2x256xf32>
    %263 = arith.select %34, %260, %262 : vector<2x256xi1>, vector<2x256xf32>
    %264 = arith.truncf %250 : vector<2x64xf32> to vector<2x64xbf16>
    %cst_64 = arith.constant dense<0.000000e+00> : vector<2x256xf32>
    %265 = tpu.matmul %264, %15, %cst_64 {dimension_numbers = #tpu.dot_dimension_numbers<[1], [0], [0], [1], [0, 0, 1, 1], [], []>} : vector<2x64xbf16>, vector<64x256xbf16>, vector<2x256xf32> -> vector<2x256xf32>
    %266 = arith.addf %263, %265 : vector<2x256xf32>
    %267 = vector.extract_strided_slice %266 {offsets = [0, 0], sizes = [2, 128], strides = [1, 1]} : vector<2x256xf32> to vector<2x128xf32>
    %268 = arith.negf %267 : vector<2x128xf32>
    %269 = math.exp %268 : vector<2x128xf32>
    %cst_65 = arith.constant 1.000000e+00 : f32
    %270 = vector.broadcast %cst_65 : f32 to vector<2x128xf32>
    %271 = arith.addf %270, %269 : vector<2x128xf32>
    %272 = arith.divf %270, %271 : vector<2x128xf32>
    %273 = vector.extract_strided_slice %266 {offsets = [0, 128], sizes = [2, 64], strides = [1, 1]} : vector<2x256xf32> to vector<2x64xf32>
    %274 = math.tanh %273 : vector<2x64xf32>
    %275 = vector.extract_strided_slice %266 {offsets = [0, 192], sizes = [2, 64], strides = [1, 1]} : vector<2x256xf32> to vector<2x64xf32>
    %276 = arith.negf %275 : vector<2x64xf32>
    %277 = math.exp %276 : vector<2x64xf32>
    %cst_66 = arith.constant 1.000000e+00 : f32
    %278 = vector.broadcast %cst_66 : f32 to vector<2x64xf32>
    %279 = arith.addf %278, %277 : vector<2x64xf32>
    %280 = arith.divf %278, %279 : vector<2x64xf32>
    %281 = vector.extract_strided_slice %272 {offsets = [0, 64], sizes = [2, 64], strides = [1, 1]} : vector<2x128xf32> to vector<2x64xf32>
    %282 = arith.mulf %281, %248 : vector<2x64xf32>
    %283 = vector.extract_strided_slice %272 {offsets = [0, 0], sizes = [2, 64], strides = [1, 1]} : vector<2x128xf32> to vector<2x64xf32>
    %284 = arith.mulf %283, %274 : vector<2x64xf32>
    %285 = arith.addf %282, %284 : vector<2x64xf32>
    %286 = math.tanh %285 : vector<2x64xf32>
    %287 = arith.mulf %280, %286 : vector<2x64xf32>
    %288 = vector.extract_strided_slice %287 {offsets = [0, 0], sizes = [2, 32], strides = [1, 1]} : vector<2x64xf32> to vector<2x32xf32>
    %c0_67 = arith.constant 0 : index
    %c6_68 = arith.constant 6 : index
    %c0_69 = arith.constant 0 : index
    %289 = vector.load %arg12[%c0_67, %c6_68, %c0_69] : memref<2x8x64xf32, #tpu.memory_space<vmem>>, vector<2x1x32xf32>
    %290 = vector.shape_cast %289 : vector<2x1x32xf32> to vector<2x32xf32>
    %291 = vector.shape_cast %288 : vector<2x32xf32> to vector<2x1x32xf32>
    tpu.vector_store %arg12[%c0_67, %c6_68, %c0_69], %291 {strides = array<i32>} : memref<2x8x64xf32, #tpu.memory_space<vmem>>, vector<2x1x32xf32>,
    %292 = vector.extract_strided_slice %287 {offsets = [0, 32], sizes = [2, 32], strides = [1, 1]} : vector<2x64xf32> to vector<2x32xf32>
    %c0_70 = arith.constant 0 : index
    %c1_71 = arith.constant 1 : index
    %c32_72 = arith.constant 32 : index
    %293 = vector.load %arg12[%c0_70, %c1_71, %c32_72] : memref<2x8x64xf32, #tpu.memory_space<vmem>>, vector<2x1x32xf32>
    %294 = vector.shape_cast %293 : vector<2x1x32xf32> to vector<2x32xf32>
    %295 = vector.shape_cast %292 : vector<2x32xf32> to vector<2x1x32xf32>
    tpu.vector_store %arg12[%c0_70, %c1_71, %c32_72], %295 {strides = array<i32>} : memref<2x8x64xf32, #tpu.memory_space<vmem>>, vector<2x1x32xf32>,
    %296 = vector.extract_strided_slice %14 {offsets = [0, 7, 0], sizes = [2, 1, 256], strides = [1, 1, 1]} : vector<2x8x256xf32> to vector<2x1x256xf32>
    %297 = vector.shape_cast %296 : vector<2x1x256xf32> to vector<2x256xf32>
    %298 = vector.extract_strided_slice %14 {offsets = [0, 0, 0], sizes = [2, 1, 256], strides = [1, 1, 1]} : vector<2x8x256xf32> to vector<2x1x256xf32>
    %299 = vector.shape_cast %298 : vector<2x1x256xf32> to vector<2x256xf32>
    %300 = arith.select %34, %297, %299 : vector<2x256xi1>, vector<2x256xf32>
    %301 = arith.truncf %287 : vector<2x64xf32> to vector<2x64xbf16>
    %cst_73 = arith.constant dense<0.000000e+00> : vector<2x256xf32>
    %302 = tpu.matmul %301, %15, %cst_73 {dimension_numbers = #tpu.dot_dimension_numbers<[1], [0], [0], [1], [0, 0, 1, 1], [], []>} : vector<2x64xbf16>, vector<64x256xbf16>, vector<2x256xf32> -> vector<2x256xf32>
    %303 = arith.addf %300, %302 : vector<2x256xf32>
    %304 = vector.extract_strided_slice %303 {offsets = [0, 0], sizes = [2, 128], strides = [1, 1]} : vector<2x256xf32> to vector<2x128xf32>
    %305 = arith.negf %304 : vector<2x128xf32>
    %306 = math.exp %305 : vector<2x128xf32>
    %cst_74 = arith.constant 1.000000e+00 : f32
    %307 = vector.broadcast %cst_74 : f32 to vector<2x128xf32>
    %308 = arith.addf %307, %306 : vector<2x128xf32>
    %309 = arith.divf %307, %308 : vector<2x128xf32>
    %310 = vector.extract_strided_slice %303 {offsets = [0, 128], sizes = [2, 64], strides = [1, 1]} : vector<2x256xf32> to vector<2x64xf32>
    %311 = math.tanh %310 : vector<2x64xf32>
    %312 = vector.extract_strided_slice %303 {offsets = [0, 192], sizes = [2, 64], strides = [1, 1]} : vector<2x256xf32> to vector<2x64xf32>
    %313 = arith.negf %312 : vector<2x64xf32>
    %314 = math.exp %313 : vector<2x64xf32>
    %cst_75 = arith.constant 1.000000e+00 : f32
    %315 = vector.broadcast %cst_75 : f32 to vector<2x64xf32>
    %316 = arith.addf %315, %314 : vector<2x64xf32>
    %317 = arith.divf %315, %316 : vector<2x64xf32>
    %318 = vector.extract_strided_slice %309 {offsets = [0, 64], sizes = [2, 64], strides = [1, 1]} : vector<2x128xf32> to vector<2x64xf32>
    %319 = arith.mulf %318, %285 : vector<2x64xf32>
    %320 = vector.extract_strided_slice %309 {offsets = [0, 0], sizes = [2, 64], strides = [1, 1]} : vector<2x128xf32> to vector<2x64xf32>
    %321 = arith.mulf %320, %311 : vector<2x64xf32>
    %322 = arith.addf %319, %321 : vector<2x64xf32>
    %323 = math.tanh %322 : vector<2x64xf32>
    %324 = arith.mulf %317, %323 : vector<2x64xf32>
    %325 = vector.extract_strided_slice %324 {offsets = [0, 0], sizes = [2, 32], strides = [1, 1]} : vector<2x64xf32> to vector<2x32xf32>
    %c0_76 = arith.constant 0 : index
    %c7_77 = arith.constant 7 : index
    %c0_78 = arith.constant 0 : index
    %326 = vector.load %arg12[%c0_76, %c7_77, %c0_78] : memref<2x8x64xf32, #tpu.memory_space<vmem>>, vector<2x1x32xf32>
    %327 = vector.shape_cast %326 : vector<2x1x32xf32> to vector<2x32xf32>
    %328 = vector.shape_cast %325 : vector<2x32xf32> to vector<2x1x32xf32>
    tpu.vector_store %arg12[%c0_76, %c7_77, %c0_78], %328 {strides = array<i32>} : memref<2x8x64xf32, #tpu.memory_space<vmem>>, vector<2x1x32xf32>,
    %329 = vector.extract_strided_slice %324 {offsets = [0, 32], sizes = [2, 32], strides = [1, 1]} : vector<2x64xf32> to vector<2x32xf32>
    %c0_79 = arith.constant 0 : index
    %c0_80 = arith.constant 0 : index
    %c32_81 = arith.constant 32 : index
    %330 = vector.load %arg12[%c0_79, %c0_80, %c32_81] : memref<2x8x64xf32, #tpu.memory_space<vmem>>, vector<2x1x32xf32>
    %331 = vector.shape_cast %330 : vector<2x1x32xf32> to vector<2x32xf32>
    %332 = vector.shape_cast %329 : vector<2x32xf32> to vector<2x1x32xf32>
    tpu.vector_store %arg12[%c0_79, %c0_80, %c32_81], %332 {strides = array<i32>} : memref<2x8x64xf32, #tpu.memory_space<vmem>>, vector<2x1x32xf32>,
    %c0_82 = arith.constant 0 : index
    %c0_83 = arith.constant 0 : index
    %c0_84 = arith.constant 0 : index
    %333 = vector.load %arg12[%c0_82, %c0_83, %c0_84] : memref<2x8x64xf32, #tpu.memory_space<vmem>>, vector<2x8x64xf32>
    %c0_85 = arith.constant 0 : index
    %c0_86 = arith.constant 0 : index
    %334 = vector.load %arg6[%c0_85, %c0_86] : memref<1x64xf32, #tpu.memory_space<vmem>>, vector<1x64xf32>
    %335 = vector.shape_cast %334 : vector<1x64xf32> to vector<1x1x64xf32>
    %336 = vector.broadcast %335 : vector<1x1x64xf32> to vector<2x8x64xf32>
    %337 = arith.mulf %333, %336 : vector<2x8x64xf32>
    %cst_87 = arith.constant dense<0.000000e+00> : vector<2x8xf32>
    %338 = vector.multi_reduction <add>, %337, %cst_87 [2] : vector<2x8x64xf32> to vector<2x8xf32>
    %c0_88 = arith.constant 0 : index
    %c0_89 = arith.constant 0 : index
    %339 = vector.load %arg7[%c0_88, %c0_89] : memref<1x1xf32, #tpu.memory_space<vmem>>, vector<1x1xf32>
    %340 = vector.broadcast %339 : vector<1x1xf32> to vector<2x8xf32>
    %341 = arith.addf %338, %340 : vector<2x8xf32>
    %cst_90 = arith.constant dense<0xFF800000> : vector<2xf32>
    %342 = vector.multi_reduction <maximumf>, %341, %cst_90 [1] : vector<2x8xf32> to vector<2xf32>
    %cst_91 = arith.constant 0xFF800000 : f32
    %343 = vector.broadcast %cst_91 : f32 to vector<2xf32>
    %344 = arith.maximumf %343, %342 : vector<2xf32>
    %345 = vector.shape_cast %344 : vector<2xf32> to vector<2x1xf32>
    %346 = vector.broadcast %345 : vector<2x1xf32> to vector<2x8xf32>
    %347 = arith.subf %341, %346 : vector<2x8xf32>
    %348 = math.exp %347 : vector<2x8xf32>
    %cst_92 = arith.constant dense<0.000000e+00> : vector<2xf32>
    %349 = vector.multi_reduction <add>, %348, %cst_92 [1] : vector<2x8xf32> to vector<2xf32>
    %350 = vector.shape_cast %349 : vector<2xf32> to vector<2x1xf32>
    %351 = vector.broadcast %350 : vector<2x1xf32> to vector<2x8xf32>
    %352 = arith.divf %348, %351 : vector<2x8xf32>
    %c0_93 = arith.constant 0 : index
    %c0_94 = arith.constant 0 : index
    %353 = vector.load %arg11[%c0_93, %c0_94] : memref<2x8xf32, #tpu.memory_space<vmem>>, vector<2x8xf32>
    tpu.vector_store %arg11[%c0_93, %c0_94], %352 {strides = array<i32>} : memref<2x8xf32, #tpu.memory_space<vmem>>, vector<2x8xf32>,
    %354 = vector.shape_cast %352 : vector<2x8xf32> to vector<2x8x1xf32>
    %355 = vector.broadcast %354 : vector<2x8x1xf32> to vector<2x8x64xf32>
    %356 = arith.mulf %355, %333 : vector<2x8x64xf32>
    %cst_95 = arith.constant dense<0.000000e+00> : vector<2x64xf32>
    %357 = vector.multi_reduction <add>, %356, %cst_95 [1] : vector<2x8x64xf32> to vector<2x64xf32>
    %c0_96 = arith.constant 0 : index
    %c0_97 = arith.constant 0 : index
    %358 = vector.load %arg8[%c0_96, %c0_97] : memref<64x10xf32, #tpu.memory_space<vmem>>, vector<64x10xf32>
    %cst_98 = arith.constant dense<0.000000e+00> : vector<2x10xf32>
    %359 = tpu.matmul %357, %358, %cst_98 {dimension_numbers = #tpu.dot_dimension_numbers<[1], [0], [0], [1], [0, 0, 1, 1], [], []>} : vector<2x64xf32>, vector<64x10xf32>, vector<2x10xf32> -> vector<2x10xf32>
    %c0_99 = arith.constant 0 : index
    %c0_100 = arith.constant 0 : index
    %360 = vector.load %arg9[%c0_99, %c0_100] : memref<1x10xf32, #tpu.memory_space<vmem>>, vector<1x10xf32>
    %361 = vector.broadcast %360 : vector<1x10xf32> to vector<2x10xf32>
    %362 = arith.addf %359, %361 : vector<2x10xf32>
    %c0_101 = arith.constant 0 : index
    %c0_102 = arith.constant 0 : index
    %363 = vector.load %arg10[%c0_101, %c0_102] : memref<2x10xf32, #tpu.memory_space<vmem>>, vector<2x10xf32>
    tpu.vector_store %arg10[%c0_101, %c0_102], %362 {strides = array<i32>} : memref<2x10xf32, #tpu.memory_space<vmem>>, vector<2x10xf32>,
    return
  }
}

</mosaic_0001>

<llo_original>
// kernel: tpu_custom_call.1
$region0: #{tpu_custom_call.1}
  #allocation0 [shape = 'u32[]', space=smem, size = 0x4, offset = 0x4, fixed_abs, tag = 'smem constant byte address 0x4 - core index']
  #allocation1 [shape = 'u32[144,128]{1,0:T(1,128)}', space=vmem, size = 0x12000, scoped, tag = 'internal scratch']
  #allocation2 [shape = 'f32[2,8,64]{2,1,0:T(8,128)}', space=vmem, size = 0x2000, scoped, tag = 'scratch operand']
  #allocation3 [shape = 'f32[1,1]{1,0:T(1,128)S(1)}', space=vmem, size = 0x200, scoped, tag = 'scoped memory for tpu_custom_call.1']
  %s0 = inlined_call_operand.hbm [shape: bf16[16,48], index: 0, kind: input, shape index: {}]
  %s1 = inlined_call_operand.vmem [shape: bf16[48,64], index: 1, kind: input, shape index: {}]
  %s2 = inlined_call_operand.vmem [shape: f32[1,64], index: 2, kind: input, shape index: {}]
  %s3 = inlined_call_operand.vmem [shape: bf16[64,256], index: 3, kind: input, shape index: {}]
  %s4 = inlined_call_operand.hbm [shape: bf16[64,256], index: 4, kind: input, shape index: {}]
  %s5 = inlined_call_operand.vmem [shape: f32[1,256], index: 5, kind: input, shape index: {}]
  %s6 = inlined_call_operand.vmem [shape: f32[1,64], index: 6, kind: input, shape index: {}]
  %s7 = inlined_call_operand.<no memory space> [shape: f32[1,1], index: 7, kind: input, shape index: {}]
  %s8 = inlined_call_operand.vmem [shape: f32[64,10], index: 8, kind: input, shape index: {}]
  %s9 = inlined_call_operand.vmem [shape: f32[1,10], index: 9, kind: input, shape index: {}]
  %s10 = inlined_call_operand.hbm [shape: f32[2,10], index: 10, kind: output, shape index: {0}]
  %s11 = inlined_call_operand.hbm [shape: f32[2,8], index: 11, kind: output, shape index: {1}]
  %12 = xla_tuple %s10, %s11
  %s13 = sld [smem:[#allocation0]]
  $region66: #{tpu_custom_call.1} parent=0
    _
  %s15 = ssub.s32 1, %s13
  %s16 = scalar_select 0, %s15, %s13
  %v17 = vstv %s7
  %18 = vst [vmem:[#allocation3] sm:$0x1] %v17
  $region1: #{tpu_custom_call.1} parent=0
    #allocation4 [shape = 'u8[4096]{0}', space=vmem, size = 0x1000, scoped, tag = 'input window, operand 0, single buffered']
    #allocation5 [shape = 's32[1]{0}', space=sflag, size = 0x4, scoped, tag = 'scoped memory for tpu_custom_call.1']
    #allocation6 [shape = 's32[1]{0}', space=sflag, size = 0x4, scoped, tag = 'scoped memory for tpu_custom_call.1']
    #allocation7 [shape = 'u8[32768]{0}', space=vmem, size = 0x8000, scoped, tag = 'input window, operand 4, single buffered']
    #allocation8 [shape = 's32[1]{0}', space=sflag, size = 0x4, scoped, tag = 'scoped memory for tpu_custom_call.1']
    #allocation9 [shape = 'u8[1024]{0}', space=vmem, size = 0x400, scoped, tag = 'output window, operand 0, single buffered']
    #allocation10 [shape = 'u8[1024]{0}', space=vmem, size = 0x400, scoped, tag = 'output window, operand 1, single buffered']
    #allocation11 [shape = 's32[1]{0}', space=sflag, size = 0x4, scoped, tag = 'scoped memory for tpu_custom_call.1']
    %19 = vsyncpa [#allocation5], 0
    %20 = vsyncpa [#allocation8], 0
    %21 = vsyncpa [#allocation6], 0
    %22 = vsyncpa [#allocation11], 0
    // Predicated region
    $region2: #{tpu_custom_call.1} parent=1 // pred_check
      _
    $region3: #{tpu_custom_call.1} parent=1 // pred_check_branch
      %24 = sbr.rel (0) target = $region5
    $region4: #{tpu_custom_call.1} parent=1 // pred_region
      %s26 = ssub.s32 128, 128
      %27 = vsyncadd [#allocation5], %s26
      %s28 = sshll.u32 [#allocation4], 4
      %s29 = int_to_ptr.vmem [resolvable:$true] %s28
      %34 = dma.hbm_to_vmem [thread:$0]  %s0, 128, %s29, [#allocation5], 64, 64, 4
    $region5: #{tpu_custom_call.1} parent=1 // pred_fallthru
      _
    // Predicated region
    $region6: #{tpu_custom_call.1} parent=1 // pred_check
      _
    $region7: #{tpu_custom_call.1} parent=1 // pred_check_branch
      %36 = sbr.rel (0) target = $region9
    $region8: #{tpu_custom_call.1} parent=1 // pred_region
      _
    $region9: #{tpu_custom_call.1} parent=1 // pred_fallthru
      _
    // Predicated region
    $region10: #{tpu_custom_call.1} parent=1 // pred_check
      _
    $region11: #{tpu_custom_call.1} parent=1 // pred_check_branch
      %38 = sbr.rel (0) target = $region13
    $region12: #{tpu_custom_call.1} parent=1 // pred_region
      _
    $region13: #{tpu_custom_call.1} parent=1 // pred_fallthru
      _
    // Predicated region
    $region14: #{tpu_custom_call.1} parent=1 // pred_check
      _
    $region15: #{tpu_custom_call.1} parent=1 // pred_check_branch
      %40 = sbr.rel (0) target = $region17
    $region16: #{tpu_custom_call.1} parent=1 // pred_region
      _
    $region17: #{tpu_custom_call.1} parent=1 // pred_fallthru
      _
    // Predicated region
    $region18: #{tpu_custom_call.1} parent=1 // pred_check
      _
    $region19: #{tpu_custom_call.1} parent=1 // pred_check_branch
      %42 = sbr.rel (0) target = $region21
    $region20: #{tpu_custom_call.1} parent=1 // pred_region
      %s44 = ssub.s32 1024, 1024
      %45 = vsyncadd [#allocation8], %s44
      %s46 = sshll.u32 [#allocation7], 4
      %s47 = int_to_ptr.vmem [resolvable:$true] %s46
      %52 = dma.hbm_to_vmem [thread:$0]  %s4, 1024, %s47, [#allocation8], 128, 128, 8
    $region21: #{tpu_custom_call.1} parent=1 // pred_fallthru
      _
    // Predicated region
    $region22: #{tpu_custom_call.1} parent=1 // pred_check
      _
    $region23: #{tpu_custom_call.1} parent=1 // pred_check_branch
      %54 = sbr.rel (0) target = $region25
    $region24: #{tpu_custom_call.1} parent=1 // pred_region
      _
    $region25: #{tpu_custom_call.1} parent=1 // pred_fallthru
      _
    // Predicated region
    $region26: #{tpu_custom_call.1} parent=1 // pred_check
      _
    $region27: #{tpu_custom_call.1} parent=1 // pred_check_branch
      %56 = sbr.rel (0) target = $region29
    $region28: #{tpu_custom_call.1} parent=1 // pred_region
      _
    $region29: #{tpu_custom_call.1} parent=1 // pred_fallthru
      _
    // Predicated region
    $region30: #{tpu_custom_call.1} parent=1 // pred_check
      _
    $region31: #{tpu_custom_call.1} parent=1 // pred_check_branch
      %58 = sbr.rel (0) target = $region33
    $region32: #{tpu_custom_call.1} parent=1 // pred_region
      _
    $region33: #{tpu_custom_call.1} parent=1 // pred_fallthru
      _
    // Predicated region
    $region34: #{tpu_custom_call.1} parent=1 // pred_check
      _
    $region35: #{tpu_custom_call.1} parent=1 // pred_check_branch
      %60 = sbr.rel (0) target = $region37
    $region36: #{tpu_custom_call.1} parent=1 // pred_region
      _
    $region37: #{tpu_custom_call.1} parent=1 // pred_fallthru
      _
    // Predicated region
    $region38: #{tpu_custom_call.1} parent=1 // pred_check
      _
    $region39: #{tpu_custom_call.1} parent=1 // pred_check_branch
      %62 = sbr.rel (0) target = $region41
    $region40: #{tpu_custom_call.1} parent=1 // pred_region
      _
    $region41: #{tpu_custom_call.1} parent=1 // pred_fallthru
      _
    // Predicated region
    $region42: #{tpu_custom_call.1} parent=1 // pred_check
      _
    $region43: #{tpu_custom_call.1} parent=1 // pred_check_branch
      %64 = sbr.rel (0) target = $region45
    $region44: #{tpu_custom_call.1} parent=1 // pred_region
      %65 = dma.done [#allocation5], 128
    $region45: #{tpu_custom_call.1} parent=1 // pred_fallthru
      _
    // Predicated region
    $region46: #{tpu_custom_call.1} parent=1 // pred_check
      _
    $region47: #{tpu_custom_call.1} parent=1 // pred_check_branch
      %67 = sbr.rel (0) target = $region49
    $region48: #{tpu_custom_call.1} parent=1 // pred_region
      %68 = dma.done [#allocation8], 1024
    $region49: #{tpu_custom_call.1} parent=1 // pred_fallthru
      _
    %v70 = vld [vmem:[#allocation4] sm:$0xf]
    %v71 = vld [vmem:[#allocation4 + $0x4] sm:$0xf]
    %v72 = vld [vmem:[%s1] sm:$0xf]
    %v73 = vld [vmem:[%s1 + $0x4] sm:$0xf]
    %v74 = vld [vmem:[%s1 + $0x8] sm:$0xf]
    %v75 = vld [vmem:[%s1 + $0xc] sm:$0xf]
    %v76 = vld [vmem:[%s1 + $0x10] sm:$0xf]
    %v77 = vld [vmem:[%s1 + $0x14] sm:$0xf]
    %v78 = vld [vmem:[%s2] sm:$0x1]
    %v80 = vlaneseq
    %v81 = vshrl.u32 %v80, 7
    %v82 = vsub.s32 0, %v81
    %v83 = vrot.slane %v78, %v82
    %v87 = vunpack.c.l.b16 %v70
    %v88 = vunpack.c.l.b16 %v71
    %v89 = vpack.c.b16 %v88, %v87
    %v96 = vunpack.c.l.b16 %v72
    %v97 = vunpack.c.l.b16 %v73
    %v98 = vunpack.c.l.b16 %v74
    %v99 = vunpack.c.l.b16 %v75
    %v100 = vunpack.c.l.b16 %v76
    %v101 = vunpack.c.l.b16 %v77
    %v102 = vpack.c.b16 %v97, %v96
    %v103 = vpack.c.b16 %v99, %v98
    %v104 = vpack.c.b16 %v101, %v100
    %vm108 = vcmask 392192
    %v110 = vsel %vm108, %v89, 0
    %112 = vmatprep.subr.bf16.mxu0 0
    %113 = vmatpush1.bf16.msra.mxu0 %v102
    %114 = vmatprep.subr.bf16.mxu0 0
    %115 = vmatpush1.bf16.msra.mxu0 %v103
    %116 = vmatprep.subr.bf16.mxu0 0
    %117 = vmatpush1.bf16.msra.mxu0 %v104
    %118 = vmatprep.subr.bf16.mxu0 0
    %119 = vmatpush1.bf16.msra.mxu0 0
    %120 = vmatprep.subr.bf16.mxu0 0
    %121 = vmatpush1.bf16.msra.mxu0 0
    %122 = vmatprep.subr.bf16.mxu0 0
    %123 = vmatpush1.bf16.msra.mxu0 0
    %124 = vmatprep.subr.bf16.mxu0 0
    %125 = vmatpush1.bf16.msra.mxu0 0
    %126 = vmatprep.subr.bf16.mxu0 0
    %127 = vmatpush1.bf16.msra.mxu0 0
    %128 = vmatprep.subr.bf16.mxu0 0
    %129 = vmatpush1.bf16.msra.mxu0 0
    %130 = vmatprep.subr.bf16.mxu0 0
    %131 = vmatpush1.bf16.msra.mxu0 0
    %132 = vmatprep.subr.bf16.mxu0 0
    %133 = vmatpush1.bf16.msra.mxu0 0
    %134 = vmatprep.subr.bf16.mxu0 0
    %135 = vmatpush1.bf16.msra.mxu0 0
    %136 = vmatprep.subr.bf16.mxu0 0
    %137 = vmatpush1.bf16.msra.mxu0 0
    %138 = vmatprep.subr.bf16.mxu0 0
    %139 = vmatpush1.bf16.msra.mxu0 0
    %140 = vmatprep.subr.bf16.mxu0 0
    %141 = vmatpush1.bf16.msra.mxu0 0
    %142 = vmatprep.subr.bf16.mxu0 0
    %143 = vmatpush1.bf16.msra.mxu0 0
    %144 = vmatprep.mubr.bf16.mxu0 0
    %145 = vmatmul.mubr.bf16.gmra.mrb[0].mxu0 %v110
    %v146 = vpop.f32.mrb[0].mxu0
    %v147 = vadd.f32 %v83, %v146
    %v148 = vpop.f32.mrb[0].mxu0
    %v149 = vpop.f32.mrb[0].mxu0
    %v150 = vadd.f32 %v83, %v149
    %v151 = vpop.f32.mrb[0].mxu0
    %152 = vdwg.mxu0
    %v153 = vmax.f32 %v147, 0.0
    %v154 = vmax.f32 %v150, 0.0
    %v155 = vpack.c.bf16 %v154, %v153
    %v156 = vld [vmem:[%s3] sm:$0xff]
    %v157 = vld [vmem:[%s3 + $0x8] sm:$0xff]
    %v158 = vld [vmem:[%s3 + $0x10] sm:$0xff]
    %v159 = vld [vmem:[%s3 + $0x18] sm:$0xff]
    %v160 = vld [vmem:[%s3 + $0x20] sm:$0xff]
    %v161 = vld [vmem:[%s3 + $0x28] sm:$0xff]
    %v162 = vld [vmem:[%s3 + $0x30] sm:$0xff]
    %v163 = vld [vmem:[%s3 + $0x38] sm:$0xff]
    %v164 = vld [vmem:[%s5] sm:$0x3]
    %v166 = vlaneseq
    %v167 = vshrl.u32 %v166, 7
    %v168 = vsub.s32 0, %v167
    %v169 = vrot.slane %v164, %v168
    %v170 = vlaneseq
    %v171 = vshrl.u32 %v170, 7
    %v172 = vsub.s32 1, %v171
    %v173 = vrot.slane %v164, %v172
    %v184 = vunpack.c.l.b16 %v156
    %v185 = vunpack.c.h.b16 %v156
    %v186 = vunpack.c.l.b16 %v157
    %v187 = vunpack.c.h.b16 %v157
    %v188 = vunpack.c.l.b16 %v158
    %v189 = vunpack.c.h.b16 %v158
    %v190 = vunpack.c.l.b16 %v159
    %v191 = vunpack.c.h.b16 %v159
    %v192 = vunpack.c.l.b16 %v160
    %v193 = vunpack.c.h.b16 %v160
    %v194 = vunpack.c.l.b16 %v161
    %v195 = vunpack.c.h.b16 %v161
    %v196 = vunpack.c.l.b16 %v162
    %v197 = vunpack.c.h.b16 %v162
    %v198 = vunpack.c.l.b16 %v163
    %v199 = vunpack.c.h.b16 %v163
    %v200 = vpack.c.b16 %v186, %v184
    %v201 = vpack.c.b16 %v187, %v185
    %v202 = vpack.c.b16 %v190, %v188
    %v203 = vpack.c.b16 %v191, %v189
    %v204 = vpack.c.b16 %v194, %v192
    %v205 = vpack.c.b16 %v195, %v193
    %v206 = vpack.c.b16 %v198, %v196
    %v207 = vpack.c.b16 %v199, %v197
    %vm216 = vcmask 523264
    %v218 = vsel %vm216, %v155, 0
    %220 = vmatprep.subr.bf16.mxu0 %v201
    %221 = vmatpush1.bf16.msra.mxu0 %v200
    %222 = vmatprep.subr.bf16.mxu0 %v203
    %223 = vmatpush1.bf16.msra.mxu0 %v202
    %224 = vmatprep.subr.bf16.mxu0 %v205
    %225 = vmatpush1.bf16.msra.mxu0 %v204
    %226 = vmatprep.subr.bf16.mxu0 %v207
    %227 = vmatpush1.bf16.msra.mxu0 %v206
    %228 = vmatprep.subr.bf16.mxu0 0
    %229 = vmatpush1.bf16.msra.mxu0 0
    %230 = vmatprep.subr.bf16.mxu0 0
    %231 = vmatpush1.bf16.msra.mxu0 0
    %232 = vmatprep.subr.bf16.mxu0 0
    %233 = vmatpush1.bf16.msra.mxu0 0
    %234 = vmatprep.subr.bf16.mxu0 0
    %235 = vmatpush1.bf16.msra.mxu0 0
    %236 = vmatprep.subr.bf16.mxu0 0
    %237 = vmatpush1.bf16.msra.mxu0 0
    %238 = vmatprep.subr.bf16.mxu0 0
    %239 = vmatpush1.bf16.msra.mxu0 0
    %240 = vmatprep.subr.bf16.mxu0 0
    %241 = vmatpush1.bf16.msra.mxu0 0
    %242 = vmatprep.subr.bf16.mxu0 0
    %243 = vmatpush1.bf16.msra.mxu0 0
    %244 = vmatprep.subr.bf16.mxu0 0
    %245 = vmatpush1.bf16.msra.mxu0 0
    %246 = vmatprep.subr.bf16.mxu0 0
    %247 = vmatpush1.bf16.msra.mxu0 0
    %248 = vmatprep.subr.bf16.mxu0 0
    %249 = vmatpush1.bf16.msra.mxu0 0
    %250 = vmatprep.subr.bf16.mxu0 0
    %251 = vmatpush1.bf16.msra.mxu0 0
    %252 = vmatprep.mubr.bf16.mxu0 0
    %253 = vmatmul.mubr.bf16.gmra.mrb[0].mxu0 %v218
    %v254 = vpop.f32.mrb[0].mxu0
    %v255 = vadd.f32 %v169, %v254
    %v256 = vpop.f32.mrb[0].mxu0
    %v257 = vadd.f32 %v173, %v256
    %v258 = vpop.f32.mrb[0].mxu0
    %v259 = vadd.f32 %v169, %v258
    %v260 = vpop.f32.mrb[0].mxu0
    %v261 = vadd.f32 %v173, %v260
    %262 = vdwg.mxu0
    %v263 = vld [vmem:[#allocation7] sm:$0xff]
    %v264 = vld [vmem:[#allocation7 + $0x8] sm:$0xff]
    %v265 = vld [vmem:[#allocation7 + $0x10] sm:$0xff]
    %v266 = vld [vmem:[#allocation7 + $0x18] sm:$0xff]
    %v267 = vld [vmem:[#allocation7 + $0x20] sm:$0xff]
    %v268 = vld [vmem:[#allocation7 + $0x28] sm:$0xff]
    %v269 = vld [vmem:[#allocation7 + $0x30] sm:$0xff]
    %v270 = vld [vmem:[#allocation7 + $0x38] sm:$0xff]
    %v271 = vlaneseq
    %v272 = vand.u32 %v271, 127
    %v273 = vadd.s32 %v272, 128
    %vm274 = vcmp.lt.s32.totalorder %v272, 0
    %v275 = vsub.s32 0, %v272
    %v276 = vsel %vm274, %v275, %v272
    %v277 = vshrl.u32 %v276, 6
    %v278 = vand.u32 %v276, 63
    %v279 = vsub.s32 0, %v278
    %v280 = vsel %vm274, %v279, %v278
    %vm281 = vcmp.lt.s32.totalorder %v273, 0
    %v282 = vsub.s32 0, %v273
    %v283 = vsel %vm281, %v282, %v273
    %v284 = vshrl.u32 %v283, 6
    %v285 = vand.u32 %v283, 63
    %v286 = vsub.s32 0, %v285
    %v287 = vsel %vm281, %v286, %v285
    %vm288 = vcmp.ne.s32.totalorder %v280, 0
    %vm289 = vcmp.ne.s32.totalorder %v287, 0
    %vm290 = vcmp.lt.s32.totalorder %v280, 0
    %vm291 = vcmp.lt.s32.totalorder %v287, 0
    %vm292 = vmand %vm290, %vm288
    %vm293 = vmand %vm291, %vm289
    %v294 = vadd.s32 %v280, 64
    %v295 = vadd.s32 %v287, 64
    %v296 = vsel %vm292, %v294, %v280
    %v297 = vsel %vm293, %v295, %v287
    %vm298 = vcmp.lt.s32.totalorder %v296, 32
    %vm299 = vcmp.lt.s32.totalorder %v297, 32
    %v304 = vrot.slane %v259, 7
    %vm305 = vcmask 1041409
    %v306 = vsel %vm305, %v304, %v255
    %v307 = vrot.slane %v261, 7
    %v308 = vsel %vm305, %v307, %v257
    %v311 = vrot.slane %v255, 7
    %v312 = vrot.slane %v259, 6
    %v313 = vsel %vm305, %v312, %v311
    %v314 = vrot.slane %v257, 7
    %v315 = vrot.slane %v261, 6
    %v316 = vsel %vm305, %v315, %v314
    %v319 = vsel %vm298, %v306, %v313
    %v320 = vsel %vm299, %v308, %v316
    %v329 = vunpack.c.l.b16 %v263
    %v330 = vunpack.c.h.b16 %v263
    %v331 = vunpack.c.l.b16 %v264
    %v332 = vunpack.c.h.b16 %v264
    %v333 = vunpack.c.l.b16 %v265
    %v334 = vunpack.c.h.b16 %v265
    %v335 = vunpack.c.l.b16 %v266
    %v336 = vunpack.c.h.b16 %v266
    %v337 = vunpack.c.l.b16 %v267
    %v338 = vunpack.c.h.b16 %v267
    %v339 = vunpack.c.l.b16 %v268
    %v340 = vunpack.c.h.b16 %v268
    %v341 = vunpack.c.l.b16 %v269
    %v342 = vunpack.c.h.b16 %v269
    %v343 = vunpack.c.l.b16 %v270
    %v344 = vunpack.c.h.b16 %v270
    %v345 = vpack.c.b16 %v331, %v329
    %v346 = vpack.c.b16 %v332, %v330
    %v347 = vpack.c.b16 %v335, %v333
    %v348 = vpack.c.b16 %v336, %v334
    %v349 = vpack.c.b16 %v339, %v337
    %v350 = vpack.c.b16 %v340, %v338
    %v351 = vpack.c.b16 %v343, %v341
    %v352 = vpack.c.b16 %v344, %v342
    %v362 = vsel %vm216, 0, 0
    %364 = vmatprep.subr.bf16.mxu0 %v346
    %365 = vmatpush1.bf16.msra.mxu0 %v345
    %366 = vmatprep.subr.bf16.mxu0 %v348
    %367 = vmatpush1.bf16.msra.mxu0 %v347
    %368 = vmatprep.subr.bf16.mxu0 %v350
    %369 = vmatpush1.bf16.msra.mxu0 %v349
    %370 = vmatprep.subr.bf16.mxu0 %v352
    %371 = vmatpush1.bf16.msra.mxu0 %v351
    %372 = vmatprep.subr.bf16.mxu0 0
    %373 = vmatpush1.bf16.msra.mxu0 0
    %374 = vmatprep.subr.bf16.mxu0 0
    %375 = vmatpush1.bf16.msra.mxu0 0
    %376 = vmatprep.subr.bf16.mxu0 0
    %377 = vmatpush1.bf16.msra.mxu0 0
    %378 = vmatprep.subr.bf16.mxu0 0
    %379 = vmatpush1.bf16.msra.mxu0 0
    %380 = vmatprep.subr.bf16.mxu0 0
    %381 = vmatpush1.bf16.msra.mxu0 0
    %382 = vmatprep.subr.bf16.mxu0 0
    %383 = vmatpush1.bf16.msra.mxu0 0
    %384 = vmatprep.subr.bf16.mxu0 0
    %385 = vmatpush1.bf16.msra.mxu0 0
    %386 = vmatprep.subr.bf16.mxu0 0
    %387 = vmatpush1.bf16.msra.mxu0 0
    %388 = vmatprep.subr.bf16.mxu0 0
    %389 = vmatpush1.bf16.msra.mxu0 0
    %390 = vmatprep.subr.bf16.mxu0 0
    %391 = vmatpush1.bf16.msra.mxu0 0
    %392 = vmatprep.subr.bf16.mxu0 0
    %393 = vmatpush1.bf16.msra.mxu0 0
    %394 = vmatprep.subr.bf16.mxu0 0
    %395 = vmatpush1.bf16.msra.mxu0 0
    %396 = vmatprep.mubr.bf16.mxu0 0
    %397 = vmatmul.mubr.bf16.gmra.mrb[0].mxu0 %v362
    %v398 = vpop.f32.mrb[0].mxu0
    %v399 = vadd.f32 0.0, %v398
    %v400 = vpop.f32.mrb[0].mxu0
    %v401 = vadd.f32 0.0, %v400
    %v402 = vpop.f32.mrb[0].mxu0
    %v403 = vpop.f32.mrb[0].mxu0
    %404 = vdwg.mxu0
    %v405 = vadd.f32 %v319, %v399
    %v406 = vadd.f32 %v320, %v401
    %v407 = vxor.u32 %v405, 2147483648
    %v408 = vmul.f32 %v407, 1.442695
    %v409 = vpow.pop %v408
    %v410 = vadd.f32 %v409, 1.0
    %v411 = vrcp.pop %v410
    %v412 = vmul.f32 1.0, %v411
    %v413 = vtanh.pop %v406
    %v414 = vxor.u32 %v406, 2147483648
    %v415 = vmul.f32 %v414, 1.442695
    %v416 = vpow.pop %v415
    %v417 = vadd.f32 %v416, 1.0
    %v418 = vrcp.pop %v417
    %v419 = vmul.f32 1.0, %v418
    %v420 = vmul.f32 %v412, 0.0
    %v421 = vmul.f32 %v412, %v413
    %423 = vrot.lane.b32.xlu0 %v421, 64
    %v424 = vpop.permute.xlu0 %423
    %v426 = vadd.f32 %v420, %v424
    %v427 = vtanh.pop %v426
    %v428 = vmul.f32 %v419, %v427
    %v431 = vunpack.c.l.s4 1966171168
    %v432 = vunpack.c.0.s8 %v431
    %v433 = vlaneseq
    %v434 = vshrl.u32 %v433, 7
    %v435 = vsub.s32 %v432, %v434
    %v436 = vrot.slane %v428, %v435
    %v437 = vcombine.high %v436, %v436
    %v439 = vunpack.c.l.s4 1966171168
    %v440 = vunpack.c.0.s8 %v439
    %v441 = vlaneseq
    %v442 = vshrl.u32 %v441, 7
    %v443 = vsub.s32 %v440, %v442
    %v444 = vrot.slane %v436, %v443
    %v446 = vunpack.c.l.s4 1966171168
    %v447 = vunpack.c.0.s8 %v446
    %v448 = vlaneseq
    %v449 = vshrl.u32 %v448, 7
    %v450 = vsub.s32 %v447, %v449
    %v451 = vrot.slane %v437, %v450
    %v452 = vlaneseq
    %v453 = vshrl.u32 %v452, 7
    %v454 = vsub.s32 0, %v453
    %v455 = vrot.slane %v444, %v454
    %v456 = vlaneseq
    %v457 = vshrl.u32 %v456, 7
    %v458 = vsub.s32 0, %v457
    %v459 = vrot.slane %v451, %v458
    %460 = vrot.lane.b32.xlu0 %v455, 64
    %v461 = vpop.permute.xlu0 %460
    %462 = vrot.lane.b32.xlu0 %v459, 64
    %v463 = vpop.permute.xlu0 %462
    %vm466 = vcmask 253952
    %467 = vst.msk [vmem:[#allocation2] sm:$0x1] %vm466, %v461
    %468 = vst.msk [vmem:[#allocation2 + $0x8] sm:$0x1] %vm466, %v463
    %vm469 = vcmask 516352
    %470 = vst.msk [vmem:[#allocation2 + $0x7] sm:$0x1] %vm469, %v461
    %471 = vst.msk [vmem:[#allocation2 + $0xf] sm:$0x1] %vm469, %v463
    %v472 = vrot.slane %v255, 1
    %v473 = vsel %vm305, %v259, %v472
    %v474 = vrot.slane %v257, 1
    %v475 = vsel %vm305, %v261, %v474
    %v478 = vrot.slane %v255, 6
    %v479 = vrot.slane %v259, 5
    %v480 = vsel %vm305, %v479, %v478
    %v481 = vrot.slane %v257, 6
    %v482 = vrot.slane %v261, 5
    %v483 = vsel %vm305, %v482, %v481
    %v486 = vsel %vm298, %v473, %v480
    %v487 = vsel %vm299, %v475, %v483
    %v488 = vpack.c.bf16 %v428, %v428
    %490 = vrot.lane.b32.xlu0 %v488, 64
    %v491 = vpop.permute.xlu0 %490
    %v493 = vsel %vm216, %v491, 0
    %495 = vmatprep.subr.bf16.mxu0 %v346
    %496 = vmatpush1.bf16.msra.mxu0 %v345
    %497 = vmatprep.subr.bf16.mxu0 %v348
    %498 = vmatpush1.bf16.msra.mxu0 %v347
    %499 = vmatprep.subr.bf16.mxu0 %v350
    %500 = vmatpush1.bf16.msra.mxu0 %v349
    %501 = vmatprep.subr.bf16.mxu0 %v352
    %502 = vmatpush1.bf16.msra.mxu0 %v351
    %503 = vmatprep.subr.bf16.mxu0 0
    %504 = vmatpush1.bf16.msra.mxu0 0
    %505 = vmatprep.subr.bf16.mxu0 0
    %506 = vmatpush1.bf16.msra.mxu0 0
    %507 = vmatprep.subr.bf16.mxu0 0
    %508 = vmatpush1.bf16.msra.mxu0 0
    %509 = vmatprep.subr.bf16.mxu0 0
    %510 = vmatpush1.bf16.msra.mxu0 0
    %511 = vmatprep.subr.bf16.mxu0 0
    %512 = vmatpush1.bf16.msra.mxu0 0
    %513 = vmatprep.subr.bf16.mxu0 0
    %514 = vmatpush1.bf16.msra.mxu0 0
    %515 = vmatprep.subr.bf16.mxu0 0
    %516 = vmatpush1.bf16.msra.mxu0 0
    %517 = vmatprep.subr.bf16.mxu0 0
    %518 = vmatpush1.bf16.msra.mxu0 0
    %519 = vmatprep.subr.bf16.mxu0 0
    %520 = vmatpush1.bf16.msra.mxu0 0
    %521 = vmatprep.subr.bf16.mxu0 0
    %522 = vmatpush1.bf16.msra.mxu0 0
    %523 = vmatprep.subr.bf16.mxu0 0
    %524 = vmatpush1.bf16.msra.mxu0 0
    %525 = vmatprep.subr.bf16.mxu0 0
    %526 = vmatpush1.bf16.msra.mxu0 0
    %527 = vmatprep.mubr.bf16.mxu0 0
    %528 = vmatmul.mubr.bf16.gmra.mrb[0].mxu0 %v493
    %v529 = vpop.f32.mrb[0].mxu0
    %v530 = vadd.f32 0.0, %v529
    %v531 = vpop.f32.mrb[0].mxu0
    %v532 = vadd.f32 0.0, %v531
    %v533 = vpop.f32.mrb[0].mxu0
    %v534 = vpop.f32.mrb[0].mxu0
    %535 = vdwg.mxu0
    %v536 = vadd.f32 %v486, %v530
    %v537 = vadd.f32 %v487, %v532
    %v538 = vxor.u32 %v536, 2147483648
    %v539 = vmul.f32 %v538, 1.442695
    %v540 = vpow.pop %v539
    %v541 = vadd.f32 %v540, 1.0
    %v542 = vrcp.pop %v541
    %v543 = vmul.f32 1.0, %v542
    %v544 = vtanh.pop %v537
    %v545 = vxor.u32 %v537, 2147483648
    %v546 = vmul.f32 %v545, 1.442695
    %v547 = vpow.pop %v546
    %v548 = vadd.f32 %v547, 1.0
    %v549 = vrcp.pop %v548
    %v550 = vmul.f32 1.0, %v549
    %v551 = vmul.f32 %v543, %v426
    %v552 = vmul.f32 %v543, %v544
    %554 = vrot.lane.b32.xlu0 %v552, 64
    %v555 = vpop.permute.xlu0 %554
    %v557 = vadd.f32 %v551, %v555
    %v558 = vtanh.pop %v557
    %v559 = vmul.f32 %v550, %v558
    %v562 = vunpack.c.l.s4 1966171168
    %v563 = vunpack.c.0.s8 %v562
    %v564 = vlaneseq
    %v565 = vshrl.u32 %v564, 7
    %v566 = vsub.s32 %v563, %v565
    %v567 = vrot.slane %v559, %v566
    %v568 = vcombine.high %v567, %v567
    %v570 = vunpack.c.l.s4 1966171168
    %v571 = vunpack.c.0.s8 %v570
    %v572 = vlaneseq
    %v573 = vshrl.u32 %v572, 7
    %v574 = vsub.s32 %v571, %v573
    %v575 = vrot.slane %v567, %v574
    %v577 = vunpack.c.l.s4 1966171168
    %v578 = vunpack.c.0.s8 %v577
    %v579 = vlaneseq
    %v580 = vshrl.u32 %v579, 7
    %v581 = vsub.s32 %v578, %v580
    %v582 = vrot.slane %v568, %v581
    %v583 = vlaneseq
    %v584 = vshrl.u32 %v583, 7
    %v585 = vsub.s32 0, %v584
    %v586 = vrot.slane %v575, %v585
    %v587 = vlaneseq
    %v588 = vshrl.u32 %v587, 7
    %v589 = vsub.s32 0, %v588
    %v590 = vrot.slane %v582, %v589
    %591 = vrot.lane.b32.xlu0 %v586, 64
    %v592 = vpop.permute.xlu0 %591
    %593 = vrot.lane.b32.xlu0 %v590, 64
    %v594 = vpop.permute.xlu0 %593
    %597 = vst.msk [vmem:[#allocation2 + $0x1] sm:$0x1] %vm466, %v592
    %598 = vst.msk [vmem:[#allocation2 + $0x9] sm:$0x1] %vm466, %v594
    %599 = vst.msk [vmem:[#allocation2 + $0x6] sm:$0x1] %vm469, %v592
    %600 = vst.msk [vmem:[#allocation2 + $0xe] sm:$0x1] %vm469, %v594
    %v601 = vrot.slane %v255, 2
    %v602 = vrot.slane %v259, 1
    %v603 = vsel %vm305, %v602, %v601
    %v604 = vrot.slane %v257, 2
    %v605 = vrot.slane %v261, 1
    %v606 = vsel %vm305, %v605, %v604
    %v609 = vrot.slane %v255, 5
    %v610 = vrot.slane %v259, 4
    %v611 = vsel %vm305, %v610, %v609
    %v612 = vrot.slane %v257, 5
    %v613 = vrot.slane %v261, 4
    %v614 = vsel %vm305, %v613, %v612
    %v617 = vsel %vm298, %v603, %v611
    %v618 = vsel %vm299, %v606, %v614
    %v619 = vpack.c.bf16 %v559, %v559
    %621 = vrot.lane.b32.xlu0 %v619, 64
    %v622 = vpop.permute.xlu0 %621
    %v624 = vsel %vm216, %v622, 0
    %626 = vmatprep.subr.bf16.mxu0 %v346
    %627 = vmatpush1.bf16.msra.mxu0 %v345
    %628 = vmatprep.subr.bf16.mxu0 %v348
    %629 = vmatpush1.bf16.msra.mxu0 %v347
    %630 = vmatprep.subr.bf16.mxu0 %v350
    %631 = vmatpush1.bf16.msra.mxu0 %v349
    %632 = vmatprep.subr.bf16.mxu0 %v352
    %633 = vmatpush1.bf16.msra.mxu0 %v351
    %634 = vmatprep.subr.bf16.mxu0 0
    %635 = vmatpush1.bf16.msra.mxu0 0
    %636 = vmatprep.subr.bf16.mxu0 0
    %637 = vmatpush1.bf16.msra.mxu0 0
    %638 = vmatprep.subr.bf16.mxu0 0
    %639 = vmatpush1.bf16.msra.mxu0 0
    %640 = vmatprep.subr.bf16.mxu0 0
    %641 = vmatpush1.bf16.msra.mxu0 0
    %642 = vmatprep.subr.bf16.mxu0 0
    %643 = vmatpush1.bf16.msra.mxu0 0
    %644 = vmatprep.subr.bf16.mxu0 0
    %645 = vmatpush1.bf16.msra.mxu0 0
    %646 = vmatprep.subr.bf16.mxu0 0
    %647 = vmatpush1.bf16.msra.mxu0 0
    %648 = vmatprep.subr.bf16.mxu0 0
    %649 = vmatpush1.bf16.msra.mxu0 0
    %650 = vmatprep.subr.bf16.mxu0 0
    %651 = vmatpush1.bf16.msra.mxu0 0
    %652 = vmatprep.subr.bf16.mxu0 0
    %653 = vmatpush1.bf16.msra.mxu0 0
    %654 = vmatprep.subr.bf16.mxu0 0
    %655 = vmatpush1.bf16.msra.mxu0 0
    %656 = vmatprep.subr.bf16.mxu0 0
    %657 = vmatpush1.bf16.msra.mxu0 0
    %658 = vmatprep.mubr.bf16.mxu0 0
    %659 = vmatmul.mubr.bf16.gmra.mrb[0].mxu0 %v624
    %v660 = vpop.f32.mrb[0].mxu0
    %v661 = vadd.f32 0.0, %v660
    %v662 = vpop.f32.mrb[0].mxu0
    %v663 = vadd.f32 0.0, %v662
    %v664 = vpop.f32.mrb[0].mxu0
    %v665 = vpop.f32.mrb[0].mxu0
    %666 = vdwg.mxu0
    %v667 = vadd.f32 %v617, %v661
    %v668 = vadd.f32 %v618, %v663
    %v669 = vxor.u32 %v667, 2147483648
    %v670 = vmul.f32 %v669, 1.442695
    %v671 = vpow.pop %v670
    %v672 = vadd.f32 %v671, 1.0
    %v673 = vrcp.pop %v672
    %v674 = vmul.f32 1.0, %v673
    %v675 = vtanh.pop %v668
    %v676 = vxor.u32 %v668, 2147483648
    %v677 = vmul.f32 %v676, 1.442695
    %v678 = vpow.pop %v677
    %v679 = vadd.f32 %v678, 1.0
    %v680 = vrcp.pop %v679
    %v681 = vmul.f32 1.0, %v680
    %v682 = vmul.f32 %v674, %v557
    %v683 = vmul.f32 %v674, %v675
    %685 = vrot.lane.b32.xlu0 %v683, 64
    %v686 = vpop.permute.xlu0 %685
    %v688 = vadd.f32 %v682, %v686
    %v689 = vtanh.pop %v688
    %v690 = vmul.f32 %v681, %v689
    %v693 = vunpack.c.l.s4 1966171168
    %v694 = vunpack.c.0.s8 %v693
    %v695 = vlaneseq
    %v696 = vshrl.u32 %v695, 7
    %v697 = vsub.s32 %v694, %v696
    %v698 = vrot.slane %v690, %v697
    %v699 = vcombine.high %v698, %v698
    %v701 = vunpack.c.l.s4 1966171168
    %v702 = vunpack.c.0.s8 %v701
    %v703 = vlaneseq
    %v704 = vshrl.u32 %v703, 7
    %v705 = vsub.s32 %v702, %v704
    %v706 = vrot.slane %v698, %v705
    %v708 = vunpack.c.l.s4 1966171168
    %v709 = vunpack.c.0.s8 %v708
    %v710 = vlaneseq
    %v711 = vshrl.u32 %v710, 7
    %v712 = vsub.s32 %v709, %v711
    %v713 = vrot.slane %v699, %v712
    %v714 = vlaneseq
    %v715 = vshrl.u32 %v714, 7
    %v716 = vsub.s32 0, %v715
    %v717 = vrot.slane %v706, %v716
    %v718 = vlaneseq
    %v719 = vshrl.u32 %v718, 7
    %v720 = vsub.s32 0, %v719
    %v721 = vrot.slane %v713, %v720
    %722 = vrot.lane.b32.xlu0 %v717, 64
    %v723 = vpop.permute.xlu0 %722
    %724 = vrot.lane.b32.xlu0 %v721, 64
    %v725 = vpop.permute.xlu0 %724
    %728 = vst.msk [vmem:[#allocation2 + $0x2] sm:$0x1] %vm466, %v723
    %729 = vst.msk [vmem:[#allocation2 + $0xa] sm:$0x1] %vm466, %v725
    %730 = vst.msk [vmem:[#allocation2 + $0x5] sm:$0x1] %vm469, %v723
    %731 = vst.msk [vmem:[#allocation2 + $0xd] sm:$0x1] %vm469, %v725
    %v732 = vrot.slane %v255, 3
    %v733 = vrot.slane %v259, 2
    %v734 = vsel %vm305, %v733, %v732
    %v735 = vrot.slane %v257, 3
    %v736 = vrot.slane %v261, 2
    %v737 = vsel %vm305, %v736, %v735
    %v740 = vrot.slane %v255, 4
    %v741 = vrot.slane %v259, 3
    %v742 = vsel %vm305, %v741, %v740
    %v743 = vrot.slane %v257, 4
    %v744 = vrot.slane %v261, 3
    %v745 = vsel %vm305, %v744, %v743
    %v748 = vsel %vm298, %v734, %v742
    %v749 = vsel %vm299, %v737, %v745
    %v750 = vpack.c.bf16 %v690, %v690
    %752 = vrot.lane.b32.xlu0 %v750, 64
    %v753 = vpop.permute.xlu0 %752
    %v755 = vsel %vm216, %v753, 0
    %757 = vmatprep.subr.bf16.mxu0 %v346
    %758 = vmatpush1.bf16.msra.mxu0 %v345
    %759 = vmatprep.subr.bf16.mxu0 %v348
    %760 = vmatpush1.bf16.msra.mxu0 %v347
    %761 = vmatprep.subr.bf16.mxu0 %v350
    %762 = vmatpush1.bf16.msra.mxu0 %v349
    %763 = vmatprep.subr.bf16.mxu0 %v352
    %764 = vmatpush1.bf16.msra.mxu0 %v351
    %765 = vmatprep.subr.bf16.mxu0 0
    %766 = vmatpush1.bf16.msra.mxu0 0
    %767 = vmatprep.subr.bf16.mxu0 0
    %768 = vmatpush1.bf16.msra.mxu0 0
    %769 = vmatprep.subr.bf16.mxu0 0
    %770 = vmatpush1.bf16.msra.mxu0 0
    %771 = vmatprep.subr.bf16.mxu0 0
    %772 = vmatpush1.bf16.msra.mxu0 0
    %773 = vmatprep.subr.bf16.mxu0 0
    %774 = vmatpush1.bf16.msra.mxu0 0
    %775 = vmatprep.subr.bf16.mxu0 0
    %776 = vmatpush1.bf16.msra.mxu0 0
    %777 = vmatprep.subr.bf16.mxu0 0
    %778 = vmatpush1.bf16.msra.mxu0 0
    %779 = vmatprep.subr.bf16.mxu0 0
    %780 = vmatpush1.bf16.msra.mxu0 0
    %781 = vmatprep.subr.bf16.mxu0 0
    %782 = vmatpush1.bf16.msra.mxu0 0
    %783 = vmatprep.subr.bf16.mxu0 0
    %784 = vmatpush1.bf16.msra.mxu0 0
    %785 = vmatprep.subr.bf16.mxu0 0
    %786 = vmatpush1.bf16.msra.mxu0 0
    %787 = vmatprep.subr.bf16.mxu0 0
    %788 = vmatpush1.bf16.msra.mxu0 0
    %789 = vmatprep.mubr.bf16.mxu0 0
    %790 = vmatmul.mubr.bf16.gmra.mrb[0].mxu0 %v755
    %v791 = vpop.f32.mrb[0].mxu0
    %v792 = vadd.f32 0.0, %v791
    %v793 = vpop.f32.mrb[0].mxu0
    %v794 = vadd.f32 0.0, %v793
    %v795 = vpop.f32.mrb[0].mxu0
    %v796 = vpop.f32.mrb[0].mxu0
    %797 = vdwg.mxu0
    %v798 = vadd.f32 %v748, %v792
    %v799 = vadd.f32 %v749, %v794
    %v800 = vxor.u32 %v798, 2147483648
    %v801 = vmul.f32 %v800, 1.442695
    %v802 = vpow.pop %v801
    %v803 = vadd.f32 %v802, 1.0
    %v804 = vrcp.pop %v803
    %v805 = vmul.f32 1.0, %v804
    %v806 = vtanh.pop %v799
    %v807 = vxor.u32 %v799, 2147483648
    %v808 = vmul.f32 %v807, 1.442695
    %v809 = vpow.pop %v808
    %v810 = vadd.f32 %v809, 1.0
    %v811 = vrcp.pop %v810
    %v812 = vmul.f32 1.0, %v811
    %v813 = vmul.f32 %v805, %v688
    %v814 = vmul.f32 %v805, %v806
    %816 = vrot.lane.b32.xlu0 %v814, 64
    %v817 = vpop.permute.xlu0 %816
    %v819 = vadd.f32 %v813, %v817
    %v820 = vtanh.pop %v819
    %v821 = vmul.f32 %v812, %v820
    %v824 = vunpack.c.l.s4 1966171168
    %v825 = vunpack.c.0.s8 %v824
    %v826 = vlaneseq
    %v827 = vshrl.u32 %v826, 7
    %v828 = vsub.s32 %v825, %v827
    %v829 = vrot.slane %v821, %v828
    %v830 = vcombine.high %v829, %v829
    %v832 = vunpack.c.l.s4 1966171168
    %v833 = vunpack.c.0.s8 %v832
    %v834 = vlaneseq
    %v835 = vshrl.u32 %v834, 7
    %v836 = vsub.s32 %v833, %v835
    %v837 = vrot.slane %v829, %v836
    %v839 = vunpack.c.l.s4 1966171168
    %v840 = vunpack.c.0.s8 %v839
    %v841 = vlaneseq
    %v842 = vshrl.u32 %v841, 7
    %v843 = vsub.s32 %v840, %v842
    %v844 = vrot.slane %v830, %v843
    %v845 = vlaneseq
    %v846 = vshrl.u32 %v845, 7
    %v847 = vsub.s32 0, %v846
    %v848 = vrot.slane %v837, %v847
    %v849 = vlaneseq
    %v850 = vshrl.u32 %v849, 7
    %v851 = vsub.s32 0, %v850
    %v852 = vrot.slane %v844, %v851
    %853 = vrot.lane.b32.xlu0 %v848, 64
    %v854 = vpop.permute.xlu0 %853
    %855 = vrot.lane.b32.xlu0 %v852, 64
    %v856 = vpop.permute.xlu0 %855
    %859 = vst.msk [vmem:[#allocation2 + $0x3] sm:$0x1] %vm466, %v854
    %860 = vst.msk [vmem:[#allocation2 + $0xb] sm:$0x1] %vm466, %v856
    %861 = vst.msk [vmem:[#allocation2 + $0x4] sm:$0x1] %vm469, %v854
    %862 = vst.msk [vmem:[#allocation2 + $0xc] sm:$0x1] %vm469, %v856
    %v863 = vsel %vm298, %v742, %v734
    %v864 = vsel %vm299, %v745, %v737
    %v865 = vpack.c.bf16 %v821, %v821
    %867 = vrot.lane.b32.xlu0 %v865, 64
    %v868 = vpop.permute.xlu0 %867
    %v870 = vsel %vm216, %v868, 0
    %872 = vmatprep.subr.bf16.mxu0 %v346
    %873 = vmatpush1.bf16.msra.mxu0 %v345
    %874 = vmatprep.subr.bf16.mxu0 %v348
    %875 = vmatpush1.bf16.msra.mxu0 %v347
    %876 = vmatprep.subr.bf16.mxu0 %v350
    %877 = vmatpush1.bf16.msra.mxu0 %v349
    %878 = vmatprep.subr.bf16.mxu0 %v352
    %879 = vmatpush1.bf16.msra.mxu0 %v351
    %880 = vmatprep.subr.bf16.mxu0 0
    %881 = vmatpush1.bf16.msra.mxu0 0
    %882 = vmatprep.subr.bf16.mxu0 0
    %883 = vmatpush1.bf16.msra.mxu0 0
    %884 = vmatprep.subr.bf16.mxu0 0
    %885 = vmatpush1.bf16.msra.mxu0 0
    %886 = vmatprep.subr.bf16.mxu0 0
    %887 = vmatpush1.bf16.msra.mxu0 0
    %888 = vmatprep.subr.bf16.mxu0 0
    %889 = vmatpush1.bf16.msra.mxu0 0
    %890 = vmatprep.subr.bf16.mxu0 0
    %891 = vmatpush1.bf16.msra.mxu0 0
    %892 = vmatprep.subr.bf16.mxu0 0
    %893 = vmatpush1.bf16.msra.mxu0 0
    %894 = vmatprep.subr.bf16.mxu0 0
    %895 = vmatpush1.bf16.msra.mxu0 0
    %896 = vmatprep.subr.bf16.mxu0 0
    %897 = vmatpush1.bf16.msra.mxu0 0
    %898 = vmatprep.subr.bf16.mxu0 0
    %899 = vmatpush1.bf16.msra.mxu0 0
    %900 = vmatprep.subr.bf16.mxu0 0
    %901 = vmatpush1.bf16.msra.mxu0 0
    %902 = vmatprep.subr.bf16.mxu0 0
    %903 = vmatpush1.bf16.msra.mxu0 0
    %904 = vmatprep.mubr.bf16.mxu0 0
    %905 = vmatmul.mubr.bf16.gmra.mrb[0].mxu0 %v870
    %v906 = vpop.f32.mrb[0].mxu0
    %v907 = vadd.f32 0.0, %v906
    %v908 = vpop.f32.mrb[0].mxu0
    %v909 = vadd.f32 0.0, %v908
    %v910 = vpop.f32.mrb[0].mxu0
    %v911 = vpop.f32.mrb[0].mxu0
    %912 = vdwg.mxu0
    %v913 = vadd.f32 %v863, %v907
    %v914 = vadd.f32 %v864, %v909
    %v915 = vxor.u32 %v913, 2147483648
    %v916 = vmul.f32 %v915, 1.442695
    %v917 = vpow.pop %v916
    %v918 = vadd.f32 %v917, 1.0
    %v919 = vrcp.pop %v918
    %v920 = vmul.f32 1.0, %v919
    %v921 = vtanh.pop %v914
    %v922 = vxor.u32 %v914, 2147483648
    %v923 = vmul.f32 %v922, 1.442695
    %v924 = vpow.pop %v923
    %v925 = vadd.f32 %v924, 1.0
    %v926 = vrcp.pop %v925
    %v927 = vmul.f32 1.0, %v926
    %v928 = vmul.f32 %v920, %v819
    %v929 = vmul.f32 %v920, %v921
    %931 = vrot.lane.b32.xlu0 %v929, 64
    %v932 = vpop.permute.xlu0 %931
    %v934 = vadd.f32 %v928, %v932
    %v935 = vtanh.pop %v934
    %v936 = vmul.f32 %v927, %v935
    %v939 = vunpack.c.l.s4 1966171168
    %v940 = vunpack.c.0.s8 %v939
    %v941 = vlaneseq
    %v942 = vshrl.u32 %v941, 7
    %v943 = vsub.s32 %v940, %v942
    %v944 = vrot.slane %v936, %v943
    %v945 = vcombine.high %v944, %v944
    %v947 = vunpack.c.l.s4 1966171168
    %v948 = vunpack.c.0.s8 %v947
    %v949 = vlaneseq
    %v950 = vshrl.u32 %v949, 7
    %v951 = vsub.s32 %v948, %v950
    %v952 = vrot.slane %v944, %v951
    %v954 = vunpack.c.l.s4 1966171168
    %v955 = vunpack.c.0.s8 %v954
    %v956 = vlaneseq
    %v957 = vshrl.u32 %v956, 7
    %v958 = vsub.s32 %v955, %v957
    %v959 = vrot.slane %v945, %v958
    %v960 = vlaneseq
    %v961 = vshrl.u32 %v960, 7
    %v962 = vsub.s32 0, %v961
    %v963 = vrot.slane %v952, %v962
    %v964 = vlaneseq
    %v965 = vshrl.u32 %v964, 7
    %v966 = vsub.s32 0, %v965
    %v967 = vrot.slane %v959, %v966
    %968 = vrot.lane.b32.xlu0 %v963, 64
    %v969 = vpop.permute.xlu0 %968
    %970 = vrot.lane.b32.xlu0 %v967, 64
    %v971 = vpop.permute.xlu0 %970
    %974 = vst.msk [vmem:[#allocation2 + $0x4] sm:$0x1] %vm466, %v969
    %975 = vst.msk [vmem:[#allocation2 + $0xc] sm:$0x1] %vm466, %v971
    %976 = vst.msk [vmem:[#allocation2 + $0x3] sm:$0x1] %vm469, %v969
    %977 = vst.msk [vmem:[#allocation2 + $0xb] sm:$0x1] %vm469, %v971
    %v978 = vsel %vm298, %v611, %v603
    %v979 = vsel %vm299, %v614, %v606
    %v980 = vpack.c.bf16 %v936, %v936
    %982 = vrot.lane.b32.xlu0 %v980, 64
    %v983 = vpop.permute.xlu0 %982
    %v985 = vsel %vm216, %v983, 0
    %987 = vmatprep.subr.bf16.mxu0 %v346
    %988 = vmatpush1.bf16.msra.mxu0 %v345
    %989 = vmatprep.subr.bf16.mxu0 %v348
    %990 = vmatpush1.bf16.msra.mxu0 %v347
    %991 = vmatprep.subr.bf16.mxu0 %v350
    %992 = vmatpush1.bf16.msra.mxu0 %v349
    %993 = vmatprep.subr.bf16.mxu0 %v352
    %994 = vmatpush1.bf16.msra.mxu0 %v351
    %995 = vmatprep.subr.bf16.mxu0 0
    %996 = vmatpush1.bf16.msra.mxu0 0
    %997 = vmatprep.subr.bf16.mxu0 0
    %998 = vmatpush1.bf16.msra.mxu0 0
    %999 = vmatprep.subr.bf16.mxu0 0
    %1000 = vmatpush1.bf16.msra.mxu0 0
    %1001 = vmatprep.subr.bf16.mxu0 0
    %1002 = vmatpush1.bf16.msra.mxu0 0
    %1003 = vmatprep.subr.bf16.mxu0 0
    %1004 = vmatpush1.bf16.msra.mxu0 0
    %1005 = vmatprep.subr.bf16.mxu0 0
    %1006 = vmatpush1.bf16.msra.mxu0 0
    %1007 = vmatprep.subr.bf16.mxu0 0
    %1008 = vmatpush1.bf16.msra.mxu0 0
    %1009 = vmatprep.subr.bf16.mxu0 0
    %1010 = vmatpush1.bf16.msra.mxu0 0
    %1011 = vmatprep.subr.bf16.mxu0 0
    %1012 = vmatpush1.bf16.msra.mxu0 0
    %1013 = vmatprep.subr.bf16.mxu0 0
    %1014 = vmatpush1.bf16.msra.mxu0 0
    %1015 = vmatprep.subr.bf16.mxu0 0
    %1016 = vmatpush1.bf16.msra.mxu0 0
    %1017 = vmatprep.subr.bf16.mxu0 0
    %1018 = vmatpush1.bf16.msra.mxu0 0
    %1019 = vmatprep.mubr.bf16.mxu0 0
    %1020 = vmatmul.mubr.bf16.gmra.mrb[0].mxu0 %v985
    %v1021 = vpop.f32.mrb[0].mxu0
    %v1022 = vadd.f32 0.0, %v1021
    %v1023 = vpop.f32.mrb[0].mxu0
    %v1024 = vadd.f32 0.0, %v1023
    %v1025 = vpop.f32.mrb[0].mxu0
    %v1026 = vpop.f32.mrb[0].mxu0
    %1027 = vdwg.mxu0
    %v1028 = vadd.f32 %v978, %v1022
    %v1029 = vadd.f32 %v979, %v1024
    %v1030 = vxor.u32 %v1028, 2147483648
    %v1031 = vmul.f32 %v1030, 1.442695
    %v1032 = vpow.pop %v1031
    %v1033 = vadd.f32 %v1032, 1.0
    %v1034 = vrcp.pop %v1033
    %v1035 = vmul.f32 1.0, %v1034
    %v1036 = vtanh.pop %v1029
    %v1037 = vxor.u32 %v1029, 2147483648
    %v1038 = vmul.f32 %v1037, 1.442695
    %v1039 = vpow.pop %v1038
    %v1040 = vadd.f32 %v1039, 1.0
    %v1041 = vrcp.pop %v1040
    %v1042 = vmul.f32 1.0, %v1041
    %v1043 = vmul.f32 %v1035, %v934
    %v1044 = vmul.f32 %v1035, %v1036
    %1046 = vrot.lane.b32.xlu0 %v1044, 64
    %v1047 = vpop.permute.xlu0 %1046
    %v1049 = vadd.f32 %v1043, %v1047
    %v1050 = vtanh.pop %v1049
    %v1051 = vmul.f32 %v1042, %v1050
    %v1054 = vunpack.c.l.s4 1966171168
    %v1055 = vunpack.c.0.s8 %v1054
    %v1056 = vlaneseq
    %v1057 = vshrl.u32 %v1056, 7
    %v1058 = vsub.s32 %v1055, %v1057
    %v1059 = vrot.slane %v1051, %v1058
    %v1060 = vcombine.high %v1059, %v1059
    %v1062 = vunpack.c.l.s4 1966171168
    %v1063 = vunpack.c.0.s8 %v1062
    %v1064 = vlaneseq
    %v1065 = vshrl.u32 %v1064, 7
    %v1066 = vsub.s32 %v1063, %v1065
    %v1067 = vrot.slane %v1059, %v1066
    %v1069 = vunpack.c.l.s4 1966171168
    %v1070 = vunpack.c.0.s8 %v1069
    %v1071 = vlaneseq
    %v1072 = vshrl.u32 %v1071, 7
    %v1073 = vsub.s32 %v1070, %v1072
    %v1074 = vrot.slane %v1060, %v1073
    %v1075 = vlaneseq
    %v1076 = vshrl.u32 %v1075, 7
    %v1077 = vsub.s32 0, %v1076
    %v1078 = vrot.slane %v1067, %v1077
    %v1079 = vlaneseq
    %v1080 = vshrl.u32 %v1079, 7
    %v1081 = vsub.s32 0, %v1080
    %v1082 = vrot.slane %v1074, %v1081
    %1083 = vrot.lane.b32.xlu0 %v1078, 64
    %v1084 = vpop.permute.xlu0 %1083
    %1085 = vrot.lane.b32.xlu0 %v1082, 64
    %v1086 = vpop.permute.xlu0 %1085
    %1089 = vst.msk [vmem:[#allocation2 + $0x5] sm:$0x1] %vm466, %v1084
    %1090 = vst.msk [vmem:[#allocation2 + $0xd] sm:$0x1] %vm466, %v1086
    %1091 = vst.msk [vmem:[#allocation2 + $0x2] sm:$0x1] %vm469, %v1084
    %1092 = vst.msk [vmem:[#allocation2 + $0xa] sm:$0x1] %vm469, %v1086
    %v1093 = vsel %vm298, %v480, %v473
    %v1094 = vsel %vm299, %v483, %v475
    %v1095 = vpack.c.bf16 %v1051, %v1051
    %1097 = vrot.lane.b32.xlu0 %v1095, 64
    %v1098 = vpop.permute.xlu0 %1097
    %v1100 = vsel %vm216, %v1098, 0
    %1102 = vmatprep.subr.bf16.mxu0 %v346
    %1103 = vmatpush1.bf16.msra.mxu0 %v345
    %1104 = vmatprep.subr.bf16.mxu0 %v348
    %1105 = vmatpush1.bf16.msra.mxu0 %v347
    %1106 = vmatprep.subr.bf16.mxu0 %v350
    %1107 = vmatpush1.bf16.msra.mxu0 %v349
    %1108 = vmatprep.subr.bf16.mxu0 %v352
    %1109 = vmatpush1.bf16.msra.mxu0 %v351
    %1110 = vmatprep.subr.bf16.mxu0 0
    %1111 = vmatpush1.bf16.msra.mxu0 0
    %1112 = vmatprep.subr.bf16.mxu0 0
    %1113 = vmatpush1.bf16.msra.mxu0 0
    %1114 = vmatprep.subr.bf16.mxu0 0
    %1115 = vmatpush1.bf16.msra.mxu0 0
    %1116 = vmatprep.subr.bf16.mxu0 0
    %1117 = vmatpush1.bf16.msra.mxu0 0
    %1118 = vmatprep.subr.bf16.mxu0 0
    %1119 = vmatpush1.bf16.msra.mxu0 0
    %1120 = vmatprep.subr.bf16.mxu0 0
    %1121 = vmatpush1.bf16.msra.mxu0 0
    %1122 = vmatprep.subr.bf16.mxu0 0
    %1123 = vmatpush1.bf16.msra.mxu0 0
    %1124 = vmatprep.subr.bf16.mxu0 0
    %1125 = vmatpush1.bf16.msra.mxu0 0
    %1126 = vmatprep.subr.bf16.mxu0 0
    %1127 = vmatpush1.bf16.msra.mxu0 0
    %1128 = vmatprep.subr.bf16.mxu0 0
    %1129 = vmatpush1.bf16.msra.mxu0 0
    %1130 = vmatprep.subr.bf16.mxu0 0
    %1131 = vmatpush1.bf16.msra.mxu0 0
    %1132 = vmatprep.subr.bf16.mxu0 0
    %1133 = vmatpush1.bf16.msra.mxu0 0
    %1134 = vmatprep.mubr.bf16.mxu0 0
    %1135 = vmatmul.mubr.bf16.gmra.mrb[0].mxu0 %v1100
    %v1136 = vpop.f32.mrb[0].mxu0
    %v1137 = vadd.f32 0.0, %v1136
    %v1138 = vpop.f32.mrb[0].mxu0
    %v1139 = vadd.f32 0.0, %v1138
    %v1140 = vpop.f32.mrb[0].mxu0
    %v1141 = vpop.f32.mrb[0].mxu0
    %1142 = vdwg.mxu0
    %v1143 = vadd.f32 %v1093, %v1137
    %v1144 = vadd.f32 %v1094, %v1139
    %v1145 = vxor.u32 %v1143, 2147483648
    %v1146 = vmul.f32 %v1145, 1.442695
    %v1147 = vpow.pop %v1146
    %v1148 = vadd.f32 %v1147, 1.0
    %v1149 = vrcp.pop %v1148
    %v1150 = vmul.f32 1.0, %v1149
    %v1151 = vtanh.pop %v1144
    %v1152 = vxor.u32 %v1144, 2147483648
    %v1153 = vmul.f32 %v1152, 1.442695
    %v1154 = vpow.pop %v1153
    %v1155 = vadd.f32 %v1154, 1.0
    %v1156 = vrcp.pop %v1155
    %v1157 = vmul.f32 1.0, %v1156
    %v1158 = vmul.f32 %v1150, %v1049
    %v1159 = vmul.f32 %v1150, %v1151
    %1161 = vrot.lane.b32.xlu0 %v1159, 64
    %v1162 = vpop.permute.xlu0 %1161
    %v1164 = vadd.f32 %v1158, %v1162
    %v1165 = vtanh.pop %v1164
    %v1166 = vmul.f32 %v1157, %v1165
    %v1169 = vunpack.c.l.s4 1966171168
    %v1170 = vunpack.c.0.s8 %v1169
    %v1171 = vlaneseq
    %v1172 = vshrl.u32 %v1171, 7
    %v1173 = vsub.s32 %v1170, %v1172
    %v1174 = vrot.slane %v1166, %v1173
    %v1175 = vcombine.high %v1174, %v1174
    %v1177 = vunpack.c.l.s4 1966171168
    %v1178 = vunpack.c.0.s8 %v1177
    %v1179 = vlaneseq
    %v1180 = vshrl.u32 %v1179, 7
    %v1181 = vsub.s32 %v1178, %v1180
    %v1182 = vrot.slane %v1174, %v1181
    %v1184 = vunpack.c.l.s4 1966171168
    %v1185 = vunpack.c.0.s8 %v1184
    %v1186 = vlaneseq
    %v1187 = vshrl.u32 %v1186, 7
    %v1188 = vsub.s32 %v1185, %v1187
    %v1189 = vrot.slane %v1175, %v1188
    %v1190 = vlaneseq
    %v1191 = vshrl.u32 %v1190, 7
    %v1192 = vsub.s32 0, %v1191
    %v1193 = vrot.slane %v1182, %v1192
    %v1194 = vlaneseq
    %v1195 = vshrl.u32 %v1194, 7
    %v1196 = vsub.s32 0, %v1195
    %v1197 = vrot.slane %v1189, %v1196
    %1198 = vrot.lane.b32.xlu0 %v1193, 64
    %v1199 = vpop.permute.xlu0 %1198
    %1200 = vrot.lane.b32.xlu0 %v1197, 64
    %v1201 = vpop.permute.xlu0 %1200
    %1204 = vst.msk [vmem:[#allocation2 + $0x6] sm:$0x1] %vm466, %v1199
    %1205 = vst.msk [vmem:[#allocation2 + $0xe] sm:$0x1] %vm466, %v1201
    %1206 = vst.msk [vmem:[#allocation2 + $0x1] sm:$0x1] %vm469, %v1199
    %1207 = vst.msk [vmem:[#allocation2 + $0x9] sm:$0x1] %vm469, %v1201
    %v1208 = vsel %vm298, %v313, %v306
    %v1209 = vsel %vm299, %v316, %v308
    %v1210 = vpack.c.bf16 %v1166, %v1166
    %1212 = vrot.lane.b32.xlu0 %v1210, 64
    %v1213 = vpop.permute.xlu0 %1212
    %v1215 = vsel %vm216, %v1213, 0
    %1217 = vmatprep.subr.bf16.mxu0 %v346
    %1218 = vmatpush1.bf16.msra.mxu0 %v345
    %1219 = vmatprep.subr.bf16.mxu0 %v348
    %1220 = vmatpush1.bf16.msra.mxu0 %v347
    %1221 = vmatprep.subr.bf16.mxu0 %v350
    %1222 = vmatpush1.bf16.msra.mxu0 %v349
    %1223 = vmatprep.subr.bf16.mxu0 %v352
    %1224 = vmatpush1.bf16.msra.mxu0 %v351
    %1225 = vmatprep.subr.bf16.mxu0 0
    %1226 = vmatpush1.bf16.msra.mxu0 0
    %1227 = vmatprep.subr.bf16.mxu0 0
    %1228 = vmatpush1.bf16.msra.mxu0 0
    %1229 = vmatprep.subr.bf16.mxu0 0
    %1230 = vmatpush1.bf16.msra.mxu0 0
    %1231 = vmatprep.subr.bf16.mxu0 0
    %1232 = vmatpush1.bf16.msra.mxu0 0
    %1233 = vmatprep.subr.bf16.mxu0 0
    %1234 = vmatpush1.bf16.msra.mxu0 0
    %1235 = vmatprep.subr.bf16.mxu0 0
    %1236 = vmatpush1.bf16.msra.mxu0 0
    %1237 = vmatprep.subr.bf16.mxu0 0
    %1238 = vmatpush1.bf16.msra.mxu0 0
    %1239 = vmatprep.subr.bf16.mxu0 0
    %1240 = vmatpush1.bf16.msra.mxu0 0
    %1241 = vmatprep.subr.bf16.mxu0 0
    %1242 = vmatpush1.bf16.msra.mxu0 0
    %1243 = vmatprep.subr.bf16.mxu0 0
    %1244 = vmatpush1.bf16.msra.mxu0 0
    %1245 = vmatprep.subr.bf16.mxu0 0
    %1246 = vmatpush1.bf16.msra.mxu0 0
    %1247 = vmatprep.subr.bf16.mxu0 0
    %1248 = vmatpush1.bf16.msra.mxu0 0
    %1249 = vmatprep.mubr.bf16.mxu0 0
    %1250 = vmatmul.mubr.bf16.gmra.mrb[0].mxu0 %v1215
    %v1251 = vpop.f32.mrb[0].mxu0
    %v1252 = vadd.f32 0.0, %v1251
    %v1253 = vpop.f32.mrb[0].mxu0
    %v1254 = vadd.f32 0.0, %v1253
    %v1255 = vpop.f32.mrb[0].mxu0
    %v1256 = vpop.f32.mrb[0].mxu0
    %1257 = vdwg.mxu0
    %v1258 = vadd.f32 %v1208, %v1252
    %v1259 = vadd.f32 %v1209, %v1254
    %v1260 = vxor.u32 %v1258, 2147483648
    %v1261 = vmul.f32 %v1260, 1.442695
    %v1262 = vpow.pop %v1261
    %v1263 = vadd.f32 %v1262, 1.0
    %v1264 = vrcp.pop %v1263
    %v1265 = vmul.f32 1.0, %v1264
    %v1266 = vtanh.pop %v1259
    %v1267 = vxor.u32 %v1259, 2147483648
    %v1268 = vmul.f32 %v1267, 1.442695
    %v1269 = vpow.pop %v1268
    %v1270 = vadd.f32 %v1269, 1.0
    %v1271 = vrcp.pop %v1270
    %v1272 = vmul.f32 1.0, %v1271
    %v1273 = vmul.f32 %v1265, %v1164
    %v1274 = vmul.f32 %v1265, %v1266
    %1276 = vrot.lane.b32.xlu0 %v1274, 64
    %v1277 = vpop.permute.xlu0 %1276
    %v1279 = vadd.f32 %v1273, %v1277
    %v1280 = vtanh.pop %v1279
    %v1281 = vmul.f32 %v1272, %v1280
    %v1284 = vunpack.c.l.s4 1966171168
    %v1285 = vunpack.c.0.s8 %v1284
    %v1286 = vlaneseq
    %v1287 = vshrl.u32 %v1286, 7
    %v1288 = vsub.s32 %v1285, %v1287
    %v1289 = vrot.slane %v1281, %v1288
    %v1290 = vcombine.high %v1289, %v1289
    %v1292 = vunpack.c.l.s4 1966171168
    %v1293 = vunpack.c.0.s8 %v1292
    %v1294 = vlaneseq
    %v1295 = vshrl.u32 %v1294, 7
    %v1296 = vsub.s32 %v1293, %v1295
    %v1297 = vrot.slane %v1289, %v1296
    %v1299 = vunpack.c.l.s4 1966171168
    %v1300 = vunpack.c.0.s8 %v1299
    %v1301 = vlaneseq
    %v1302 = vshrl.u32 %v1301, 7
    %v1303 = vsub.s32 %v1300, %v1302
    %v1304 = vrot.slane %v1290, %v1303
    %v1305 = vlaneseq
    %v1306 = vshrl.u32 %v1305, 7
    %v1307 = vsub.s32 0, %v1306
    %v1308 = vrot.slane %v1297, %v1307
    %v1309 = vlaneseq
    %v1310 = vshrl.u32 %v1309, 7
    %v1311 = vsub.s32 0, %v1310
    %v1312 = vrot.slane %v1304, %v1311
    %1313 = vrot.lane.b32.xlu0 %v1308, 64
    %v1314 = vpop.permute.xlu0 %1313
    %1315 = vrot.lane.b32.xlu0 %v1312, 64
    %v1316 = vpop.permute.xlu0 %1315
    %1319 = vst.msk [vmem:[#allocation2 + $0x7] sm:$0x1] %vm466, %v1314
    %1320 = vst.msk [vmem:[#allocation2 + $0xf] sm:$0x1] %vm466, %v1316
    %1321 = vst.msk [vmem:[#allocation2] sm:$0x1] %vm469, %v1314
    %1322 = vst.msk [vmem:[#allocation2 + $0x8] sm:$0x1] %vm469, %v1316
    %v1323 = vld [vmem:[#allocation2] sm:$0xff]
    %v1324 = vld [vmem:[#allocation2 + $0x8] sm:$0xff]
    %v1325 = vld [vmem:[%s6] sm:$0x1]
    %v1327 = vlaneseq
    %v1328 = vshrl.u32 %v1327, 7
    %v1329 = vsub.s32 0, %v1328
    %v1330 = vrot.slane %v1325, %v1329
    %v1332 = vmul.f32 %v1323, %v1330
    %v1333 = vmul.f32 %v1324, %v1330
    %v1334 = vsel %vm216, %v1332, 0.0
    %1335 = vadd.xlane.f32.xlu0 %v1334
    %v1336 = vpop.xlane.xlu0 %1335
    %v1337 = vsel %vm216, %v1333, 0.0
    %1338 = vadd.xlane.f32.xlu0 %v1337
    %v1339 = vpop.xlane.xlu0 %1338
    %v1340 = vld [vmem:[#allocation3] sm:$0x1]
    %v1342 = vlaneseq
    %v1343 = vshrl.u32 %v1342, 7
    %v1344 = vsub.s32 0, %v1343
    %v1345 = vrot.slane %v1340, %v1344
    %1346 = vset.pattern.permute.xlu0 0
    %1347 = vperm.xlu0 %1346, %v1345
    %v1348 = vpop.permute.xlu0 %1347
    %v1350 = vadd.f32 %v1336, %v1348
    %v1351 = vadd.f32 %v1339, %v1348
    %v1354 = vlaneseq
    %v1355 = vshrl.u32 %v1354, 7
    %v1356 = vsub.s32 %v272, %v1355
    %v1357 = vrot.slane %v1350, %v1356
    %v1358 = vlaneseq
    %v1359 = vshrl.u32 %v1358, 7
    %v1360 = vsub.s32 %v272, %v1359
    %v1361 = vrot.slane %v1351, %v1360
    %v1362 = vsel %vm305, %v1361, %v1357
    %vm1364 = vcmask 58368
    %v1365 = vsel %vm1364, %v1362, -inf
    %1366 = vmax.xlane.f32.xlu0 %v1365
    %v1367 = vpop.xlane.xlu0 %1366
    %v1369 = vlaneseq
    %v1370 = vshrl.u32 %v1369, 7
    %v1371 = vsub.s32 0, %v1370
    %v1372 = vrot.slane %v1367, %v1371
    %v1373 = vlaneseq
    %v1374 = vshrl.u32 %v1373, 7
    %v1375 = vsub.s32 1, %v1374
    %v1376 = vrot.slane %v1367, %v1375
    %v1379 = vsub.f32 %v1350, %v1372
    %v1380 = vsub.f32 %v1351, %v1376
    %v1381 = vmul.f32 %v1379, 1.442695
    %v1382 = vpow.pop %v1381
    %v1383 = vmul.f32 %v1380, 1.442695
    %v1384 = vpow.pop %v1383
    %1387 = vset.pattern.permute.xlu0 0
    %1388 = vperm.xlu0 %1387, %v1382
    %v1389 = vpop.permute.xlu0 %1388
    %1390 = vset.pattern.permute.xlu0 0
    %1391 = vperm.xlu0 %1390, %v1384
    %v1392 = vpop.permute.xlu0 %1391
    %v1393 = vlaneseq
    %v1394 = vshrl.u32 %v1393, 7
    %v1395 = vsub.s32 %v272, %v1394
    %v1396 = vrot.slane %v1389, %v1395
    %v1397 = vlaneseq
    %v1398 = vshrl.u32 %v1397, 7
    %v1399 = vsub.s32 %v272, %v1398
    %v1400 = vrot.slane %v1392, %v1399
    %v1401 = vsel %vm305, %v1400, %v1396
    %v1403 = vsel %vm1364, %v1401, 0.0
    %1404 = vadd.xlane.f32.xlu0 %v1403
    %v1405 = vpop.xlane.xlu0 %1404
    %v1407 = vlaneseq
    %v1408 = vshrl.u32 %v1407, 7
    %v1409 = vsub.s32 0, %v1408
    %v1410 = vrot.slane %v1405, %v1409
    %v1411 = vlaneseq
    %v1412 = vshrl.u32 %v1411, 7
    %v1413 = vsub.s32 1, %v1412
    %v1414 = vrot.slane %v1405, %v1413
    %v1417 = vrcp.pop %v1410
    %v1418 = vmul.f32 %v1382, %v1417
    %v1419 = vrcp.pop %v1414
    %v1420 = vmul.f32 %v1384, %v1419
    %1423 = vset.pattern.permute.xlu0 0
    %1424 = vperm.xlu0 %1423, %v1418
    %v1425 = vpop.permute.xlu0 %1424
    %1426 = vset.pattern.permute.xlu0 0
    %1427 = vperm.xlu0 %1426, %v1420
    %v1428 = vpop.permute.xlu0 %1427
    %v1429 = vlaneseq
    %v1430 = vshrl.u32 %v1429, 7
    %v1431 = vsub.s32 %v272, %v1430
    %v1432 = vrot.slane %v1425, %v1431
    %v1433 = vlaneseq
    %v1434 = vshrl.u32 %v1433, 7
    %v1435 = vsub.s32 %v272, %v1434
    %v1436 = vrot.slane %v1428, %v1435
    %v1437 = vsel %vm305, %v1436, %v1432
    %1439 = vst.msk [vmem:[#allocation10] sm:$0x3] %vm1364, %v1437
    %v1442 = vmul.f32 %v1425, %v1323
    %v1443 = vmul.f32 %v1428, %v1324
    %v1444 = vsel %vm216, %v1442, 0.0
    %v1445 = vrot.slane %v1444, 4
    %v1446 = vadd.f32 %v1444, %v1445
    %v1447 = vrot.slane %v1446, 2
    %v1448 = vadd.f32 %v1446, %v1447
    %v1449 = vrot.slane %v1448, 1
    %v1450 = vadd.f32 %v1448, %v1449
    %v1451 = vsel %vm216, %v1443, 0.0
    %v1452 = vrot.slane %v1451, 4
    %v1453 = vadd.f32 %v1451, %v1452
    %v1454 = vrot.slane %v1453, 2
    %v1455 = vadd.f32 %v1453, %v1454
    %v1456 = vrot.slane %v1455, 1
    %v1457 = vadd.f32 %v1455, %v1456
    %v1458 = vld [vmem:[%s8] sm:$0xff]
    %v1459 = vld [vmem:[%s8 + $0x8] sm:$0xff]
    %v1460 = vld [vmem:[%s8 + $0x10] sm:$0xff]
    %v1461 = vld [vmem:[%s8 + $0x18] sm:$0xff]
    %v1462 = vld [vmem:[%s8 + $0x20] sm:$0xff]
    %v1463 = vld [vmem:[%s8 + $0x28] sm:$0xff]
    %v1464 = vld [vmem:[%s8 + $0x30] sm:$0xff]
    %v1465 = vld [vmem:[%s8 + $0x38] sm:$0xff]
    %v1466 = vld [vmem:[%s9] sm:$0x1]
    %v1468 = vlaneseq
    %v1469 = vshrl.u32 %v1468, 7
    %v1470 = vsub.s32 0, %v1469
    %v1471 = vrot.slane %v1466, %v1470
    %v1475 = vsel %vm305, %v1457, %v1450
    %v1476 = vsel %vm216, %v1475, 0
    %1478 = vmatprep.subr.mxu0 0.0
    %1479 = vmatpush1.msra.mxu0 %v1458
    %1480 = vmatprep.subr.mxu0 0.0
    %1481 = vmatpush1.msra.mxu0 %v1459
    %1482 = vmatprep.subr.mxu0 0.0
    %1483 = vmatpush1.msra.mxu0 %v1460
    %1484 = vmatprep.subr.mxu0 0.0
    %1485 = vmatpush1.msra.mxu0 %v1461
    %1486 = vmatprep.subr.mxu0 0.0
    %1487 = vmatpush1.msra.mxu0 %v1462
    %1488 = vmatprep.subr.mxu0 0.0
    %1489 = vmatpush1.msra.mxu0 %v1463
    %1490 = vmatprep.subr.mxu0 0.0
    %1491 = vmatpush1.msra.mxu0 %v1464
    %1492 = vmatprep.subr.mxu0 0.0
    %1493 = vmatpush1.msra.mxu0 %v1465
    %1494 = vmatprep.subr.mxu0 0.0
    %1495 = vmatpush1.msra.mxu0 0.0
    %1496 = vmatprep.subr.mxu0 0.0
    %1497 = vmatpush1.msra.mxu0 0.0
    %1498 = vmatprep.subr.mxu0 0.0
    %1499 = vmatpush1.msra.mxu0 0.0
    %1500 = vmatprep.subr.mxu0 0.0
    %1501 = vmatpush1.msra.mxu0 0.0
    %1502 = vmatprep.subr.mxu0 0.0
    %1503 = vmatpush1.msra.mxu0 0.0
    %1504 = vmatprep.subr.mxu0 0.0
    %1505 = vmatpush1.msra.mxu0 0.0
    %1506 = vmatprep.subr.mxu0 0.0
    %1507 = vmatpush1.msra.mxu0 0.0
    %1508 = vmatprep.subr.mxu0 0.0
    %1509 = vmatpush1.msra.mxu0 0.0
    %1510 = vmatprep.subr.mxu0 0.0
    %1511 = vmatpush1.msra.mxu0 0.0
    %1512 = vmatprep.subr.mxu0 0.0
    %1513 = vmatpush1.msra.mxu0 0.0
    %1514 = vmatprep.subr.mxu0 0.0
    %1515 = vmatpush1.msra.mxu0 0.0
    %1516 = vmatprep.subr.mxu0 0.0
    %1517 = vmatpush1.msra.mxu0 0.0
    %1518 = vmatprep.subr.mxu0 0.0
    %1519 = vmatpush1.msra.mxu0 0.0
    %1520 = vmatprep.subr.mxu0 0.0
    %1521 = vmatpush1.msra.mxu0 0.0
    %1522 = vmatprep.subr.mxu0 0.0
    %1523 = vmatpush1.msra.mxu0 0.0
    %1524 = vmatprep.subr.mxu0 0.0
    %1525 = vmatpush1.msra.mxu0 0.0
    %1526 = vmatprep.subr.mxu0 0.0
    %1527 = vmatpush1.msra.mxu0 0.0
    %1528 = vmatprep.subr.mxu0 0.0
    %1529 = vmatpush1.msra.mxu0 0.0
    %1530 = vmatprep.subr.mxu0 0.0
    %1531 = vmatpush1.msra.mxu0 0.0
    %1532 = vmatprep.subr.mxu0 0.0
    %1533 = vmatpush1.msra.mxu0 0.0
    %1534 = vmatprep.subr.mxu0 0.0
    %1535 = vmatpush1.msra.mxu0 0.0
    %1536 = vmatprep.subr.mxu0 0.0
    %1537 = vmatpush1.msra.mxu0 0.0
    %1538 = vmatprep.subr.mxu0 0.0
    %1539 = vmatpush1.msra.mxu0 0.0
    %1540 = vmatprep.subr.mxu0 0.0
    %1541 = vmatpush1.msra.mxu0 0.0
    %1542 = vmatprep.mubr.f32.mxu0 0.0
    %1543 = vmatmul.mubr.f32.gmra.mrb[0].mxu0 %v1476
    %v1544 = vpop.f32.mrb[0].mxu0
    %v1545 = vadd.f32 %v1471, %v1544
    %v1546 = vpop.f32.mrb[0].mxu0
    %1547 = vdwg.mxu0
    %vm1548 = vcmask 74752
    %1549 = vst.msk [vmem:[#allocation9] sm:$0x3] %vm1548, %v1545
    // Predicated region
    $region50: #{tpu_custom_call.1} parent=1 // pred_check
      _
    $region51: #{tpu_custom_call.1} parent=1 // pred_check_branch
      %1551 = sbr.rel (0) target = $region53
    $region52: #{tpu_custom_call.1} parent=1 // pred_region
      %s1553 = ssub.s32 32, 32
      %1554 = vsyncadd [#allocation6], %s1553
      %s1556 = sshll.u32 [#allocation9], 4
      %s1557 = int_to_ptr.vmem [resolvable:$true] %s1556
      %1559 = dma.vmem_to_hbm [thread:$0]  %s1557, 32, %s10, [#allocation6]
    $region53: #{tpu_custom_call.1} parent=1 // pred_fallthru
      _
    // Predicated region
    $region54: #{tpu_custom_call.1} parent=1 // pred_check
      _
    $region55: #{tpu_custom_call.1} parent=1 // pred_check_branch
      %1561 = sbr.rel (0) target = $region57
    $region56: #{tpu_custom_call.1} parent=1 // pred_region
      %s1563 = ssub.s32 32, 32
      %1564 = vsyncadd [#allocation11], %s1563
      %s1566 = sshll.u32 [#allocation10], 4
      %s1567 = int_to_ptr.vmem [resolvable:$true] %s1566
      %1569 = dma.vmem_to_hbm [thread:$0]  %s1567, 32, %s11, [#allocation11]
    $region57: #{tpu_custom_call.1} parent=1 // pred_fallthru
      _
    // Predicated region
    $region58: #{tpu_custom_call.1} parent=1 // pred_check
      _
    $region59: #{tpu_custom_call.1} parent=1 // pred_check_branch
      %1571 = sbr.rel (0) target = $region61
    $region60: #{tpu_custom_call.1} parent=1 // pred_region
      %1572 = dma.done [#allocation6], 32
    $region61: #{tpu_custom_call.1} parent=1 // pred_fallthru
      _
    // Predicated region
    $region62: #{tpu_custom_call.1} parent=1 // pred_check
      _
    $region63: #{tpu_custom_call.1} parent=1 // pred_check_branch
      %1574 = sbr.rel (0) target = $region65
    $region64: #{tpu_custom_call.1} parent=1 // pred_region
      %1575 = dma.done [#allocation11], 32
    $region65: #{tpu_custom_call.1} parent=1 // pred_fallthru
      _
    %1576 = vsyncpa [#allocation5], 1
    %1577 = vsyncpa [#allocation8], 1
    %1578 = vsyncpa [#allocation6], 1
    %1579 = vsyncpa [#allocation11], 1

</llo_original>
